<compile_context>
chip_gen: v7x
topology: tpu7x:2x2x1
jax: 0.10.0
libtpu: 0.0.40
codegen_flags: <defaults>
</compile_context>

<pallas_src>
import functools

import jax
import jax.numpy as jnp
from jax.experimental import pallas as pl
from jax.experimental.pallas import tpu as pltpu

BN_EPS = 1e-5
NEG_SLOPE = 0.2


def _pick_cout_tile(k_sq, cin, cout, budget_bytes=8 * 1024 * 1024):
    """Largest power-of-two divisor of cout (>=128 when tiled) whose weight tile
    (k_sq * cin * tco * 4 bytes) fits the single-buffer VMEM budget."""
    tco = cout
    while tco > 128 and k_sq * cin * tco * 4 > budget_bytes:
        tco //= 2
    return tco


def _conv_bn_lrelu_kernel(x_ref, w_ref, scale_ref, bias_ref, o_ref, *,
                          k_h, k_w, stride, w_out, neg_slope):
    """One output row (w_out, cout_tile) of fused conv + affine(BN) + LeakyReLU.

    x_ref:     (Hp, Wp, Cin)        padded input image (batch dim squeezed)
    w_ref:     (k_h*k_w, Cin, Tco)  weight tile
    scale_ref: (1, Tco)             folded BN scale (gamma / sqrt(var + eps))
    bias_ref:  (1, Tco)             folded BN bias  (beta - mean * scale)
    o_ref:     (w_out, Tco)         output row (batch/row dims squeezed)
    """
    oh = pl.program_id(2)
    acc = jnp.zeros(o_ref.shape, dtype=jnp.float32)
    for i in range(k_h):
        h_idx = oh * stride + i
        for j in range(k_w):
            if stride == 1:
                patch = x_ref[h_idx, pl.ds(j, w_out), :]
            else:
                patch = x_ref[h_idx, pl.ds(j, w_out, stride), :]
            acc = acc + jnp.dot(patch, w_ref[i * k_w + j],
                                preferred_element_type=jnp.float32)
    y = acc * scale_ref[...] + bias_ref[...]
    y = jnp.where(y >= 0.0, y, neg_slope * y)
    o_ref[...] = y.astype(o_ref.dtype)


def conv_bn_lrelu(x_nhwc, w_hwio, scale, bias, *, stride, pad,
                  neg_slope=NEG_SLOPE):
    """Fused Conv2d(bias=False) + per-channel affine + LeakyReLU, NHWC/HWIO."""
    n, h, w, cin = x_nhwc.shape
    k_h, k_w, w_cin, cout = w_hwio.shape
    assert w_cin == cin
    h_out = (h + 2 * pad - k_h) // stride + 1
    w_out = (w + 2 * pad - k_w) // stride + 1
    hp, wp = h + 2 * pad, w + 2 * pad

    x_pad = jnp.pad(x_nhwc, ((0, 0), (pad, pad), (pad, pad), (0, 0)))
    w_flat = w_hwio.reshape(k_h * k_w, cin, cout).astype(jnp.float32)
    scale2 = jnp.reshape(scale, (1, cout)).astype(jnp.float32)
    bias2 = jnp.reshape(bias, (1, cout)).astype(jnp.float32)

    tco = _pick_cout_tile(k_h * k_w, cin, cout)
    n_co = cout // tco
    grid = (n, n_co, h_out)

    kernel = functools.partial(
        _conv_bn_lrelu_kernel,
        k_h=k_h, k_w=k_w, stride=stride, w_out=w_out, neg_slope=neg_slope)

    return pl.pallas_call(
        kernel,
        out_shape=jax.ShapeDtypeStruct((n, h_out, w_out, cout), jnp.float32),
        grid=grid,
        in_specs=[
            # Whole padded image per batch element; block index constant across the
            # inner grid axes -> stays VMEM-resident (no re-DMA per row / cout tile).
            pl.BlockSpec((None, hp, wp, cin), lambda b, co, oh: (b, 0, 0, 0)),
            # Weight tile: resident across output rows, streamed per cout tile.
            pl.BlockSpec((k_h * k_w, cin, tco), lambda b, co, oh: (0, 0, co)),
            pl.BlockSpec((1, tco), lambda b, co, oh: (0, co)),
            pl.BlockSpec((1, tco), lambda b, co, oh: (0, co)),
        ],
        out_specs=pl.BlockSpec((None, None, w_out, tco),
                               lambda b, co, oh: (b, oh, 0, co)),
        compiler_params=pltpu.CompilerParams(
            dimension_semantics=("parallel", "arbitrary", "arbitrary"),
            vmem_limit_bytes=32 * 1024 * 1024,
        ),
    )(x_pad, w_flat, scale2, bias2)


def downsample3_forward(x_nchw, params):
    """params: list of dicts with keys w (HWIO), gamma, beta, mean, var, stride,
    pad, has_bn. Input/output are NCHW float32 to match the PyTorch module."""
    x = jnp.transpose(x_nchw, (0, 2, 3, 1)).astype(jnp.float32)   # NHWC
    for p in params:
        cout = p["w"].shape[-1]
        if p["has_bn"]:
            scale = p["gamma"] * jax.lax.rsqrt(p["var"] + BN_EPS)
            bias = p["beta"] - p["mean"] * scale
        else:
            scale = jnp.ones((cout,), jnp.float32)
            bias = jnp.zeros((cout,), jnp.float32)
        x = conv_bn_lrelu(x, p["w"], scale, bias,
                          stride=p["stride"], pad=p["pad"])
    return jnp.transpose(x, (0, 3, 1, 2))                          # NCHW


def reference_forward(x_nchw, params):
    """Pure-JAX reference (XLA convs) for numerical validation."""
    x = jnp.transpose(x_nchw, (0, 2, 3, 1)).astype(jnp.float32)
    for p in params:
        y = jax.lax.conv_general_dilated(
            x, p["w"],
            window_strides=(p["stride"], p["stride"]),
            padding=[(p["pad"], p["pad"]), (p["pad"], p["pad"])],
            dimension_numbers=("NHWC", "HWIO", "NHWC"),
            precision=jax.lax.Precision.HIGHEST)
        if p["has_bn"]:
            y = (y - p["mean"]) / jnp.sqrt(p["var"] + BN_EPS) * p["gamma"] + p["beta"]
        x = jnp.where(y >= 0.0, y, NEG_SLOPE * y)
    return jnp.transpose(x, (0, 3, 1, 2))


if __name__ == "__main__":
    key = jax.random.PRNGKey(0)

    # Smallest spatial size the 6 stride-2 convs allow: 64x64 -> 1x1.
    B, H, W = 2, 64, 64
    layer_defs = [
        # (cin, cout, k, stride, pad, has_bn)
        (3,    64,   4, 2, 1, False),
        (64,   128,  4, 2, 1, True),
        (128,  256,  4, 2, 1, True),
        (256,  512,  4, 2, 1, True),
        (512,  1024, 4, 2, 1, True),
        (1024, 2048, 4, 2, 1, True),
        (2048, 1024, 3, 1, 1, True),
        (1024, 512,  3, 1, 1, True),
    ]

    keys = jax.random.split(key, len(layer_defs) + 1)
    x = jax.random.normal(keys[-1], (B, 3, H, W), dtype=jnp.float32)

    params = []
    for li, (cin, cout, k, stride, pad, has_bn) in enumerate(layer_defs):
        kw_, kb, km, kv, kg = jax.random.split(keys[li], 5)
        std = (2.0 / ((1.0 + NEG_SLOPE ** 2) * k * k * cin)) ** 0.5
        w = jax.random.normal(kw_, (k, k, cin, cout), dtype=jnp.float32) * std
        if has_bn:
            gamma = 1.0 + 0.1 * jax.random.normal(kg, (cout,), dtype=jnp.float32)
            beta = 0.1 * jax.random.normal(kb, (cout,), dtype=jnp.float32)
            mean = 0.1 * jax.random.normal(km, (cout,), dtype=jnp.float32)
            var = 1.0 + 0.1 * jax.random.uniform(kv, (cout,), dtype=jnp.float32)
        else:
            gamma = jnp.ones((cout,), jnp.float32)
            beta = jnp.zeros((cout,), jnp.float32)
            mean = jnp.zeros((cout,), jnp.float32)
            var = jnp.ones((cout,), jnp.float32)
        params.append(dict(w=w, gamma=gamma, beta=beta, mean=mean, var=var,
                           stride=stride, pad=pad, has_bn=has_bn))

    out = downsample3_forward(x, params)
    jax.block_until_ready(out)
    assert out.shape == (B, 512, H // 64, W // 64), out.shape

    ref = reference_forward(x, params)
    jax.block_until_ready(ref)

    max_err = float(jnp.max(jnp.abs(out - ref)))
    assert jnp.allclose(out, ref, atol=5e-3, rtol=5e-3), f"max abs err {max_err}"

    print("KERNEL_OK")
</pallas_src>

<mosaic_0001>
module attributes {stable_mosaic.version = 11 : i64} {
  func.func @_conv_bn_lrelu_kernel(%arg0: i32, %arg1: i32, %arg2: i32, %arg3: memref<1x66x66x3xf32, #tpu.memory_space<vmem>>, %arg4: memref<16x3x64xf32, #tpu.memory_space<vmem>>, %arg5: memref<1x64xf32, #tpu.memory_space<vmem>>, %arg6: memref<1x64xf32, #tpu.memory_space<vmem>>, %arg7: memref<1x1x32x64xf32, #tpu.memory_space<vmem>>) attributes {dimension_semantics = [#tpu.dimension_semantics<parallel>, #tpu.dimension_semantics<arbitrary>, #tpu.dimension_semantics<arbitrary>], iteration_bounds = array<i64: 2, 1, 32>, scalar_prefetch = 0 : i64, scratch_operands = 0 : i64, tpu.core_type = #tpu.core_type<tc>, window_params = [{transform_indices = @transform_0, window_bounds = array<i64: 1, 66, 66, 3>}, {transform_indices = @transform_1, window_bounds = array<i64: 16, 3, 64>}, {transform_indices = @transform_2, window_bounds = array<i64: 1, 64>}, {transform_indices = @transform_3, window_bounds = array<i64: 1, 64>}, {transform_indices = @transform_4, window_bounds = array<i64: 1, 1, 32, 64>}]} {
    %cst = arith.constant 0.000000e+00 : f32
    %0 = vector.broadcast %cst : f32 to vector<32x64xf32>
    %c2_i32 = arith.constant 2 : i32
    %1 = arith.muli %arg2, %c2_i32 : i32
    %c0_i32 = arith.constant 0 : i32
    %2 = arith.addi %1, %c0_i32 : i32
    %c0 = arith.constant 0 : index
    %3 = arith.index_cast %2 : i32 to index
    %c0_0 = arith.constant 0 : index
    %c0_1 = arith.constant 0 : index
    %4 = tpu.strided_load %arg3[%c0, %3, %c0_0, %c0_1] {strides = array<i32: 1, 1, 2, 1>} : memref<1x66x66x3xf32, #tpu.memory_space<vmem>>, vector<1x1x32x3xf32>
    %5 = vector.shape_cast %4 : vector<1x1x32x3xf32> to vector<32x3xf32>
    %c0_2 = arith.constant 0 : index
    %c0_3 = arith.constant 0 : index
    %c0_4 = arith.constant 0 : index
    %6 = vector.load %arg4[%c0_2, %c0_3, %c0_4] : memref<16x3x64xf32, #tpu.memory_space<vmem>>, vector<1x3x64xf32>
    %7 = vector.shape_cast %6 : vector<1x3x64xf32> to vector<3x64xf32>
    %cst_5 = arith.constant dense<0.000000e+00> : vector<32x64xf32>
    %8 = tpu.matmul %5, %7, %cst_5 {dimension_numbers = #tpu.dot_dimension_numbers<[1], [0], [0], [1], [0, 0, 1, 1], [], []>} : vector<32x3xf32>, vector<3x64xf32>, vector<32x64xf32> -> vector<32x64xf32>
    %9 = arith.addf %0, %8 : vector<32x64xf32>
    %c0_6 = arith.constant 0 : index
    %10 = arith.index_cast %2 : i32 to index
    %c1 = arith.constant 1 : index
    %c0_7 = arith.constant 0 : index
    %11 = tpu.strided_load %arg3[%c0_6, %10, %c1, %c0_7] {strides = array<i32: 1, 1, 2, 1>} : memref<1x66x66x3xf32, #tpu.memory_space<vmem>>, vector<1x1x32x3xf32>
    %12 = vector.shape_cast %11 : vector<1x1x32x3xf32> to vector<32x3xf32>
    %c1_8 = arith.constant 1 : index
    %c0_9 = arith.constant 0 : index
    %c0_10 = arith.constant 0 : index
    %13 = vector.load %arg4[%c1_8, %c0_9, %c0_10] : memref<16x3x64xf32, #tpu.memory_space<vmem>>, vector<1x3x64xf32>
    %14 = vector.shape_cast %13 : vector<1x3x64xf32> to vector<3x64xf32>
    %cst_11 = arith.constant dense<0.000000e+00> : vector<32x64xf32>
    %15 = tpu.matmul %12, %14, %cst_11 {dimension_numbers = #tpu.dot_dimension_numbers<[1], [0], [0], [1], [0, 0, 1, 1], [], []>} : vector<32x3xf32>, vector<3x64xf32>, vector<32x64xf32> -> vector<32x64xf32>
    %16 = arith.addf %9, %15 : vector<32x64xf32>
    %c0_12 = arith.constant 0 : index
    %17 = arith.index_cast %2 : i32 to index
    %c2 = arith.constant 2 : index
    %c0_13 = arith.constant 0 : index
    %18 = tpu.strided_load %arg3[%c0_12, %17, %c2, %c0_13] {strides = array<i32: 1, 1, 2, 1>} : memref<1x66x66x3xf32, #tpu.memory_space<vmem>>, vector<1x1x32x3xf32>
    %19 = vector.shape_cast %18 : vector<1x1x32x3xf32> to vector<32x3xf32>
    %c2_14 = arith.constant 2 : index
    %c0_15 = arith.constant 0 : index
    %c0_16 = arith.constant 0 : index
    %20 = vector.load %arg4[%c2_14, %c0_15, %c0_16] : memref<16x3x64xf32, #tpu.memory_space<vmem>>, vector<1x3x64xf32>
    %21 = vector.shape_cast %20 : vector<1x3x64xf32> to vector<3x64xf32>
    %cst_17 = arith.constant dense<0.000000e+00> : vector<32x64xf32>
    %22 = tpu.matmul %19, %21, %cst_17 {dimension_numbers = #tpu.dot_dimension_numbers<[1], [0], [0], [1], [0, 0, 1, 1], [], []>} : vector<32x3xf32>, vector<3x64xf32>, vector<32x64xf32> -> vector<32x64xf32>
    %23 = arith.addf %16, %22 : vector<32x64xf32>
    %c0_18 = arith.constant 0 : index
    %24 = arith.index_cast %2 : i32 to index
    %c3 = arith.constant 3 : index
    %c0_19 = arith.constant 0 : index
    %25 = tpu.strided_load %arg3[%c0_18, %24, %c3, %c0_19] {strides = array<i32: 1, 1, 2, 1>} : memref<1x66x66x3xf32, #tpu.memory_space<vmem>>, vector<1x1x32x3xf32>
    %26 = vector.shape_cast %25 : vector<1x1x32x3xf32> to vector<32x3xf32>
    %c3_20 = arith.constant 3 : index
    %c0_21 = arith.constant 0 : index
    %c0_22 = arith.constant 0 : index
    %27 = vector.load %arg4[%c3_20, %c0_21, %c0_22] : memref<16x3x64xf32, #tpu.memory_space<vmem>>, vector<1x3x64xf32>
    %28 = vector.shape_cast %27 : vector<1x3x64xf32> to vector<3x64xf32>
    %cst_23 = arith.constant dense<0.000000e+00> : vector<32x64xf32>
    %29 = tpu.matmul %26, %28, %cst_23 {dimension_numbers = #tpu.dot_dimension_numbers<[1], [0], [0], [1], [0, 0, 1, 1], [], []>} : vector<32x3xf32>, vector<3x64xf32>, vector<32x64xf32> -> vector<32x64xf32>
    %30 = arith.addf %23, %29 : vector<32x64xf32>
    %c2_i32_24 = arith.constant 2 : i32
    %31 = arith.muli %arg2, %c2_i32_24 : i32
    %c1_i32 = arith.constant 1 : i32
    %32 = arith.addi %31, %c1_i32 : i32
    %c0_25 = arith.constant 0 : index
    %33 = arith.index_cast %32 : i32 to index
    %c0_26 = arith.constant 0 : index
    %c0_27 = arith.constant 0 : index
    %34 = tpu.strided_load %arg3[%c0_25, %33, %c0_26, %c0_27] {strides = array<i32: 1, 1, 2, 1>} : memref<1x66x66x3xf32, #tpu.memory_space<vmem>>, vector<1x1x32x3xf32>
    %35 = vector.shape_cast %34 : vector<1x1x32x3xf32> to vector<32x3xf32>
    %c4 = arith.constant 4 : index
    %c0_28 = arith.constant 0 : index
    %c0_29 = arith.constant 0 : index
    %36 = vector.load %arg4[%c4, %c0_28, %c0_29] : memref<16x3x64xf32, #tpu.memory_space<vmem>>, vector<1x3x64xf32>
    %37 = vector.shape_cast %36 : vector<1x3x64xf32> to vector<3x64xf32>
    %cst_30 = arith.constant dense<0.000000e+00> : vector<32x64xf32>
    %38 = tpu.matmul %35, %37, %cst_30 {dimension_numbers = #tpu.dot_dimension_numbers<[1], [0], [0], [1], [0, 0, 1, 1], [], []>} : vector<32x3xf32>, vector<3x64xf32>, vector<32x64xf32> -> vector<32x64xf32>
    %39 = arith.addf %30, %38 : vector<32x64xf32>
    %c0_31 = arith.constant 0 : index
    %40 = arith.index_cast %32 : i32 to index
    %c1_32 = arith.constant 1 : index
    %c0_33 = arith.constant 0 : index
    %41 = tpu.strided_load %arg3[%c0_31, %40, %c1_32, %c0_33] {strides = array<i32: 1, 1, 2, 1>} : memref<1x66x66x3xf32, #tpu.memory_space<vmem>>, vector<1x1x32x3xf32>
    %42 = vector.shape_cast %41 : vector<1x1x32x3xf32> to vector<32x3xf32>
    %c5 = arith.constant 5 : index
    %c0_34 = arith.constant 0 : index
    %c0_35 = arith.constant 0 : index
    %43 = vector.load %arg4[%c5, %c0_34, %c0_35] : memref<16x3x64xf32, #tpu.memory_space<vmem>>, vector<1x3x64xf32>
    %44 = vector.shape_cast %43 : vector<1x3x64xf32> to vector<3x64xf32>
    %cst_36 = arith.constant dense<0.000000e+00> : vector<32x64xf32>
    %45 = tpu.matmul %42, %44, %cst_36 {dimension_numbers = #tpu.dot_dimension_numbers<[1], [0], [0], [1], [0, 0, 1, 1], [], []>} : vector<32x3xf32>, vector<3x64xf32>, vector<32x64xf32> -> vector<32x64xf32>
    %46 = arith.addf %39, %45 : vector<32x64xf32>
    %c0_37 = arith.constant 0 : index
    %47 = arith.index_cast %32 : i32 to index
    %c2_38 = arith.constant 2 : index
    %c0_39 = arith.constant 0 : index
    %48 = tpu.strided_load %arg3[%c0_37, %47, %c2_38, %c0_39] {strides = array<i32: 1, 1, 2, 1>} : memref<1x66x66x3xf32, #tpu.memory_space<vmem>>, vector<1x1x32x3xf32>
    %49 = vector.shape_cast %48 : vector<1x1x32x3xf32> to vector<32x3xf32>
    %c6 = arith.constant 6 : index
    %c0_40 = arith.constant 0 : index
    %c0_41 = arith.constant 0 : index
    %50 = vector.load %arg4[%c6, %c0_40, %c0_41] : memref<16x3x64xf32, #tpu.memory_space<vmem>>, vector<1x3x64xf32>
    %51 = vector.shape_cast %50 : vector<1x3x64xf32> to vector<3x64xf32>
    %cst_42 = arith.constant dense<0.000000e+00> : vector<32x64xf32>
    %52 = tpu.matmul %49, %51, %cst_42 {dimension_numbers = #tpu.dot_dimension_numbers<[1], [0], [0], [1], [0, 0, 1, 1], [], []>} : vector<32x3xf32>, vector<3x64xf32>, vector<32x64xf32> -> vector<32x64xf32>
    %53 = arith.addf %46, %52 : vector<32x64xf32>
    %c0_43 = arith.constant 0 : index
    %54 = arith.index_cast %32 : i32 to index
    %c3_44 = arith.constant 3 : index
    %c0_45 = arith.constant 0 : index
    %55 = tpu.strided_load %arg3[%c0_43, %54, %c3_44, %c0_45] {strides = array<i32: 1, 1, 2, 1>} : memref<1x66x66x3xf32, #tpu.memory_space<vmem>>, vector<1x1x32x3xf32>
    %56 = vector.shape_cast %55 : vector<1x1x32x3xf32> to vector<32x3xf32>
    %c7 = arith.constant 7 : index
    %c0_46 = arith.constant 0 : index
    %c0_47 = arith.constant 0 : index
    %57 = vector.load %arg4[%c7, %c0_46, %c0_47] : memref<16x3x64xf32, #tpu.memory_space<vmem>>, vector<1x3x64xf32>
    %58 = vector.shape_cast %57 : vector<1x3x64xf32> to vector<3x64xf32>
    %cst_48 = arith.constant dense<0.000000e+00> : vector<32x64xf32>
    %59 = tpu.matmul %56, %58, %cst_48 {dimension_numbers = #tpu.dot_dimension_numbers<[1], [0], [0], [1], [0, 0, 1, 1], [], []>} : vector<32x3xf32>, vector<3x64xf32>, vector<32x64xf32> -> vector<32x64xf32>
    %60 = arith.addf %53, %59 : vector<32x64xf32>
    %c2_i32_49 = arith.constant 2 : i32
    %61 = arith.muli %arg2, %c2_i32_49 : i32
    %c2_i32_50 = arith.constant 2 : i32
    %62 = arith.addi %61, %c2_i32_50 : i32
    %c0_51 = arith.constant 0 : index
    %63 = arith.index_cast %62 : i32 to index
    %c0_52 = arith.constant 0 : index
    %c0_53 = arith.constant 0 : index
    %64 = tpu.strided_load %arg3[%c0_51, %63, %c0_52, %c0_53] {strides = array<i32: 1, 1, 2, 1>} : memref<1x66x66x3xf32, #tpu.memory_space<vmem>>, vector<1x1x32x3xf32>
    %65 = vector.shape_cast %64 : vector<1x1x32x3xf32> to vector<32x3xf32>
    %c8 = arith.constant 8 : index
    %c0_54 = arith.constant 0 : index
    %c0_55 = arith.constant 0 : index
    %66 = vector.load %arg4[%c8, %c0_54, %c0_55] : memref<16x3x64xf32, #tpu.memory_space<vmem>>, vector<1x3x64xf32>
    %67 = vector.shape_cast %66 : vector<1x3x64xf32> to vector<3x64xf32>
    %cst_56 = arith.constant dense<0.000000e+00> : vector<32x64xf32>
    %68 = tpu.matmul %65, %67, %cst_56 {dimension_numbers = #tpu.dot_dimension_numbers<[1], [0], [0], [1], [0, 0, 1, 1], [], []>} : vector<32x3xf32>, vector<3x64xf32>, vector<32x64xf32> -> vector<32x64xf32>
    %69 = arith.addf %60, %68 : vector<32x64xf32>
    %c0_57 = arith.constant 0 : index
    %70 = arith.index_cast %62 : i32 to index
    %c1_58 = arith.constant 1 : index
    %c0_59 = arith.constant 0 : index
    %71 = tpu.strided_load %arg3[%c0_57, %70, %c1_58, %c0_59] {strides = array<i32: 1, 1, 2, 1>} : memref<1x66x66x3xf32, #tpu.memory_space<vmem>>, vector<1x1x32x3xf32>
    %72 = vector.shape_cast %71 : vector<1x1x32x3xf32> to vector<32x3xf32>
    %c9 = arith.constant 9 : index
    %c0_60 = arith.constant 0 : index
    %c0_61 = arith.constant 0 : index
    %73 = vector.load %arg4[%c9, %c0_60, %c0_61] : memref<16x3x64xf32, #tpu.memory_space<vmem>>, vector<1x3x64xf32>
    %74 = vector.shape_cast %73 : vector<1x3x64xf32> to vector<3x64xf32>
    %cst_62 = arith.constant dense<0.000000e+00> : vector<32x64xf32>
    %75 = tpu.matmul %72, %74, %cst_62 {dimension_numbers = #tpu.dot_dimension_numbers<[1], [0], [0], [1], [0, 0, 1, 1], [], []>} : vector<32x3xf32>, vector<3x64xf32>, vector<32x64xf32> -> vector<32x64xf32>
    %76 = arith.addf %69, %75 : vector<32x64xf32>
    %c0_63 = arith.constant 0 : index
    %77 = arith.index_cast %62 : i32 to index
    %c2_64 = arith.constant 2 : index
    %c0_65 = arith.constant 0 : index
    %78 = tpu.strided_load %arg3[%c0_63, %77, %c2_64, %c0_65] {strides = array<i32: 1, 1, 2, 1>} : memref<1x66x66x3xf32, #tpu.memory_space<vmem>>, vector<1x1x32x3xf32>
    %79 = vector.shape_cast %78 : vector<1x1x32x3xf32> to vector<32x3xf32>
    %c10 = arith.constant 10 : index
    %c0_66 = arith.constant 0 : index
    %c0_67 = arith.constant 0 : index
    %80 = vector.load %arg4[%c10, %c0_66, %c0_67] : memref<16x3x64xf32, #tpu.memory_space<vmem>>, vector<1x3x64xf32>
    %81 = vector.shape_cast %80 : vector<1x3x64xf32> to vector<3x64xf32>
    %cst_68 = arith.constant dense<0.000000e+00> : vector<32x64xf32>
    %82 = tpu.matmul %79, %81, %cst_68 {dimension_numbers = #tpu.dot_dimension_numbers<[1], [0], [0], [1], [0, 0, 1, 1], [], []>} : vector<32x3xf32>, vector<3x64xf32>, vector<32x64xf32> -> vector<32x64xf32>
    %83 = arith.addf %76, %82 : vector<32x64xf32>
    %c0_69 = arith.constant 0 : index
    %84 = arith.index_cast %62 : i32 to index
    %c3_70 = arith.constant 3 : index
    %c0_71 = arith.constant 0 : index
    %85 = tpu.strided_load %arg3[%c0_69, %84, %c3_70, %c0_71] {strides = array<i32: 1, 1, 2, 1>} : memref<1x66x66x3xf32, #tpu.memory_space<vmem>>, vector<1x1x32x3xf32>
    %86 = vector.shape_cast %85 : vector<1x1x32x3xf32> to vector<32x3xf32>
    %c11 = arith.constant 11 : index
    %c0_72 = arith.constant 0 : index
    %c0_73 = arith.constant 0 : index
    %87 = vector.load %arg4[%c11, %c0_72, %c0_73] : memref<16x3x64xf32, #tpu.memory_space<vmem>>, vector<1x3x64xf32>
    %88 = vector.shape_cast %87 : vector<1x3x64xf32> to vector<3x64xf32>
    %cst_74 = arith.constant dense<0.000000e+00> : vector<32x64xf32>
    %89 = tpu.matmul %86, %88, %cst_74 {dimension_numbers = #tpu.dot_dimension_numbers<[1], [0], [0], [1], [0, 0, 1, 1], [], []>} : vector<32x3xf32>, vector<3x64xf32>, vector<32x64xf32> -> vector<32x64xf32>
    %90 = arith.addf %83, %89 : vector<32x64xf32>
    %c2_i32_75 = arith.constant 2 : i32
    %91 = arith.muli %arg2, %c2_i32_75 : i32
    %c3_i32 = arith.constant 3 : i32
    %92 = arith.addi %91, %c3_i32 : i32
    %c0_76 = arith.constant 0 : index
    %93 = arith.index_cast %92 : i32 to index
    %c0_77 = arith.constant 0 : index
    %c0_78 = arith.constant 0 : index
    %94 = tpu.strided_load %arg3[%c0_76, %93, %c0_77, %c0_78] {strides = array<i32: 1, 1, 2, 1>} : memref<1x66x66x3xf32, #tpu.memory_space<vmem>>, vector<1x1x32x3xf32>
    %95 = vector.shape_cast %94 : vector<1x1x32x3xf32> to vector<32x3xf32>
    %c12 = arith.constant 12 : index
    %c0_79 = arith.constant 0 : index
    %c0_80 = arith.constant 0 : index
    %96 = vector.load %arg4[%c12, %c0_79, %c0_80] : memref<16x3x64xf32, #tpu.memory_space<vmem>>, vector<1x3x64xf32>
    %97 = vector.shape_cast %96 : vector<1x3x64xf32> to vector<3x64xf32>
    %cst_81 = arith.constant dense<0.000000e+00> : vector<32x64xf32>
    %98 = tpu.matmul %95, %97, %cst_81 {dimension_numbers = #tpu.dot_dimension_numbers<[1], [0], [0], [1], [0, 0, 1, 1], [], []>} : vector<32x3xf32>, vector<3x64xf32>, vector<32x64xf32> -> vector<32x64xf32>
    %99 = arith.addf %90, %98 : vector<32x64xf32>
    %c0_82 = arith.constant 0 : index
    %100 = arith.index_cast %92 : i32 to index
    %c1_83 = arith.constant 1 : index
    %c0_84 = arith.constant 0 : index
    %101 = tpu.strided_load %arg3[%c0_82, %100, %c1_83, %c0_84] {strides = array<i32: 1, 1, 2, 1>} : memref<1x66x66x3xf32, #tpu.memory_space<vmem>>, vector<1x1x32x3xf32>
    %102 = vector.shape_cast %101 : vector<1x1x32x3xf32> to vector<32x3xf32>
    %c13 = arith.constant 13 : index
    %c0_85 = arith.constant 0 : index
    %c0_86 = arith.constant 0 : index
    %103 = vector.load %arg4[%c13, %c0_85, %c0_86] : memref<16x3x64xf32, #tpu.memory_space<vmem>>, vector<1x3x64xf32>
    %104 = vector.shape_cast %103 : vector<1x3x64xf32> to vector<3x64xf32>
    %cst_87 = arith.constant dense<0.000000e+00> : vector<32x64xf32>
    %105 = tpu.matmul %102, %104, %cst_87 {dimension_numbers = #tpu.dot_dimension_numbers<[1], [0], [0], [1], [0, 0, 1, 1], [], []>} : vector<32x3xf32>, vector<3x64xf32>, vector<32x64xf32> -> vector<32x64xf32>
    %106 = arith.addf %99, %105 : vector<32x64xf32>
    %c0_88 = arith.constant 0 : index
    %107 = arith.index_cast %92 : i32 to index
    %c2_89 = arith.constant 2 : index
    %c0_90 = arith.constant 0 : index
    %108 = tpu.strided_load %arg3[%c0_88, %107, %c2_89, %c0_90] {strides = array<i32: 1, 1, 2, 1>} : memref<1x66x66x3xf32, #tpu.memory_space<vmem>>, vector<1x1x32x3xf32>
    %109 = vector.shape_cast %108 : vector<1x1x32x3xf32> to vector<32x3xf32>
    %c14 = arith.constant 14 : index
    %c0_91 = arith.constant 0 : index
    %c0_92 = arith.constant 0 : index
    %110 = vector.load %arg4[%c14, %c0_91, %c0_92] : memref<16x3x64xf32, #tpu.memory_space<vmem>>, vector<1x3x64xf32>
    %111 = vector.shape_cast %110 : vector<1x3x64xf32> to vector<3x64xf32>
    %cst_93 = arith.constant dense<0.000000e+00> : vector<32x64xf32>
    %112 = tpu.matmul %109, %111, %cst_93 {dimension_numbers = #tpu.dot_dimension_numbers<[1], [0], [0], [1], [0, 0, 1, 1], [], []>} : vector<32x3xf32>, vector<3x64xf32>, vector<32x64xf32> -> vector<32x64xf32>
    %113 = arith.addf %106, %112 : vector<32x64xf32>
    %c0_94 = arith.constant 0 : index
    %114 = arith.index_cast %92 : i32 to index
    %c3_95 = arith.constant 3 : index
    %c0_96 = arith.constant 0 : index
    %115 = tpu.strided_load %arg3[%c0_94, %114, %c3_95, %c0_96] {strides = array<i32: 1, 1, 2, 1>} : memref<1x66x66x3xf32, #tpu.memory_space<vmem>>, vector<1x1x32x3xf32>
    %116 = vector.shape_cast %115 : vector<1x1x32x3xf32> to vector<32x3xf32>
    %c15 = arith.constant 15 : index
    %c0_97 = arith.constant 0 : index
    %c0_98 = arith.constant 0 : index
    %117 = vector.load %arg4[%c15, %c0_97, %c0_98] : memref<16x3x64xf32, #tpu.memory_space<vmem>>, vector<1x3x64xf32>
    %118 = vector.shape_cast %117 : vector<1x3x64xf32> to vector<3x64xf32>
    %cst_99 = arith.constant dense<0.000000e+00> : vector<32x64xf32>
    %119 = tpu.matmul %116, %118, %cst_99 {dimension_numbers = #tpu.dot_dimension_numbers<[1], [0], [0], [1], [0, 0, 1, 1], [], []>} : vector<32x3xf32>, vector<3x64xf32>, vector<32x64xf32> -> vector<32x64xf32>
    %120 = arith.addf %113, %119 : vector<32x64xf32>
    %c0_100 = arith.constant 0 : index
    %c0_101 = arith.constant 0 : index
    %121 = vector.load %arg5[%c0_100, %c0_101] : memref<1x64xf32, #tpu.memory_space<vmem>>, vector<1x64xf32>
    %122 = vector.broadcast %121 : vector<1x64xf32> to vector<32x64xf32>
    %123 = arith.mulf %120, %122 : vector<32x64xf32>
    %c0_102 = arith.constant 0 : index
    %c0_103 = arith.constant 0 : index
    %124 = vector.load %arg6[%c0_102, %c0_103] : memref<1x64xf32, #tpu.memory_space<vmem>>, vector<1x64xf32>
    %125 = vector.broadcast %124 : vector<1x64xf32> to vector<32x64xf32>
    %126 = arith.addf %123, %125 : vector<32x64xf32>
    %cst_104 = arith.constant 0.000000e+00 : f32
    %127 = vector.broadcast %cst_104 : f32 to vector<32x64xf32>
    %128 = arith.cmpf oge, %126, %127 : vector<32x64xf32>
    %cst_105 = arith.constant 2.000000e-01 : f32
    %129 = vector.broadcast %cst_105 : f32 to vector<32x64xf32>
    %130 = arith.mulf %129, %126 : vector<32x64xf32>
    %131 = arith.select %128, %126, %130 : vector<32x64xi1>, vector<32x64xf32>
    %c0_106 = arith.constant 0 : index
    %c0_107 = arith.constant 0 : index
    %c0_108 = arith.constant 0 : index
    %c0_109 = arith.constant 0 : index
    %132 = vector.load %arg7[%c0_106, %c0_107, %c0_108, %c0_109] : memref<1x1x32x64xf32, #tpu.memory_space<vmem>>, vector<1x1x32x64xf32>
    %133 = vector.shape_cast %132 : vector<1x1x32x64xf32> to vector<32x64xf32>
    %134 = vector.shape_cast %131 : vector<32x64xf32> to vector<1x1x32x64xf32>
    tpu.vector_store %arg7[%c0_106, %c0_107, %c0_108, %c0_109], %134 {strides = array<i32>} : memref<1x1x32x64xf32, #tpu.memory_space<vmem>>, vector<1x1x32x64xf32>,
    return
  }
  func.func @transform_0(%arg0: i32, %arg1: i32, %arg2: i32) -> (i32, i32, i32, i32) {
    %c0_i32 = arith.constant 0 : i32
    %c0_i32_0 = arith.constant 0 : i32
    %c0_i32_1 = arith.constant 0 : i32
    %c0_i32_2 = arith.constant 0 : i32
    return %arg0, %c0_i32, %c0_i32_0, %c0_i32_1 : i32, i32, i32, i32
  }
  func.func @transform_1(%arg0: i32, %arg1: i32, %arg2: i32) -> (i32, i32, i32) {
    %c0_i32 = arith.constant 0 : i32
    %c0_i32_0 = arith.constant 0 : i32
    %c0_i32_1 = arith.constant 0 : i32
    return %c0_i32, %c0_i32_0, %arg1 : i32, i32, i32
  }
  func.func @transform_2(%arg0: i32, %arg1: i32, %arg2: i32) -> (i32, i32) {
    %c0_i32 = arith.constant 0 : i32
    %c0_i32_0 = arith.constant 0 : i32
    return %c0_i32, %arg1 : i32, i32
  }
  func.func @transform_3(%arg0: i32, %arg1: i32, %arg2: i32) -> (i32, i32) {
    %c0_i32 = arith.constant 0 : i32
    %c0_i32_0 = arith.constant 0 : i32
    return %c0_i32, %arg1 : i32, i32
  }
  func.func @transform_4(%arg0: i32, %arg1: i32, %arg2: i32) -> (i32, i32, i32, i32) {
    %c0_i32 = arith.constant 0 : i32
    %c0_i32_0 = arith.constant 0 : i32
    return %arg0, %arg2, %c0_i32, %arg1 : i32, i32, i32, i32
  }
}

</mosaic_0001>

<llo_original>
// kernel: tpu_custom_call.1
$region0: #{tpu_custom_call.1}
  #allocation0 [shape = 'u32[]', space=smem, size = 0x4, offset = 0x4, fixed_abs, tag = 'smem constant byte address 0x4 - core index']
  #allocation1 [shape = 'u32[144,128]{1,0:T(1,128)}', space=vmem, size = 0x12000, scoped, tag = 'internal scratch']
  %s0 = inlined_call_operand.vmem [shape: f32[2,66,66,3], index: 0, kind: input, shape index: {}]
  %s1 = inlined_call_operand.vmem [shape: f32[16,3,64], index: 1, kind: input, shape index: {}]
  %s2 = inlined_call_operand.vmem [shape: f32[1,64], index: 2, kind: input, shape index: {}]
  %s3 = inlined_call_operand.vmem [shape: f32[1,64], index: 3, kind: input, shape index: {}]
  %s4 = inlined_call_operand.hbm [shape: f32[2,32,32,64], index: 4, kind: output, shape index: {}]
  %s5 = sld [smem:[#allocation0]]
  $region49: #{tpu_custom_call.1} parent=0
    _
  %s7 = ssub.s32 1, %s5
  %s8 = scalar_select 0, %s7, %s5
  $region1: #{tpu_custom_call.1} parent=0
    #allocation2 [shape = 'u8[32768]{0}', space=vmem, size = 0x8000, scoped, tag = 'output window, operand 0']
    #allocation3 [shape = 's32[2]{0}', space=sflag, size = 0x8, scoped, tag = 'scoped memory for tpu_custom_call.1']
    %9 = vsyncpa [#allocation3], 0
    %s10 = scalar_lea.sflag [#allocation3], 1
    %11 = vsyncpa %s10, 0
    loop: start=0, step=1, limit=66
    $region2: #{tpu_custom_call.1} parent=1 // loop_pre_header
      _
    $region3: #{tpu_custom_call.1} parent=1 // loop_header
      %s13 = sphi 0, %s17
      %p14 = scmp.ge.s32.totalorder %s13, 66
      %s20 = sphi 0, %s39
      %s21 = sphi 0, %s35
      %s22 = sphi 0, %s31
      %s23 = sphi 0, %s20
      %s24 = sphi 0, %s21
      %s25 = sphi 0, %s22
      %s26 = sphi 0, %s23
      %s27 = sphi 0, %s24
      %s28 = sphi 0, %s25
      %s42 = sphi 0, %s44
      %s45 = sphi 0, %s42
      %s46 = sphi 0, %s45
      %s62 = sphi 0, %s46
      %s68 = sphi 0, %s70
      %s71 = sphi 0, %s68
      %s72 = sphi 0, %s71
      %s88 = sphi 0, %s72
      %s94 = sphi 0, %s96
      %s97 = sphi 0, %s94
      %s98 = sphi 0, %s97
      %s114 = sphi 0, %s98
      %s120 = sphi 0, %s122
      %s123 = sphi 0, %s120
      %s124 = sphi 0, %s123
      %s140 = sphi 0, %s124
      %s150 = sphi 0, %s152
      %s153 = sphi 0, %s150
      %s154 = sphi 0, %s153
      %s170 = sphi 0, %s154
    $region4: #{tpu_custom_call.1} parent=1 // loop_header_branch
      %16 = sbr.rel (%p14) target = $region8
    $region5: #{tpu_custom_call.1} parent=1 // loop_body
      %s18 = ssub.s32 %s13, 1
      %s19 = ssub.s32 %s13, 2
      %s29 = sadd.s32 1, %s22
      %p30 = scmp.ge.s32.totalorder %s29, 32
      %s31 = scalar_select %p30, 0, %s29
      %s32 = sadd.s32 1, %s21
      %s33 = scalar_select %p30, %s32, %s21
      %p34 = scmp.ge.s32.totalorder %s33, 1
      %s35 = scalar_select %p34, 0, %s33
      %s36 = sadd.s32 1, %s20
      %s37 = scalar_select %p34, %s36, %s20
      %p38 = scmp.ge.s32.totalorder %s37, 2
      %s39 = scalar_select %p38, 0, %s37
      %s40 = ssub.s32 %s20, %s39
      %p41 = scmp.eq.s32.totalorder %s40, 0
      %s43 = sadd.s32 %s42, 1
      %s44 = scalar_select %p41, %s42, %s43
      %p47 = pneg %p41
      %p48 = scmp.eq.s32.totalorder %s13, 63
      %p49 = por %p47, %p48
      %p50 = scmp.ne.s32.totalorder %s42, %s45
      %p51 = scmp.eq.s32.totalorder %s13, 0
      %p52 = por %p50, %p51
      %p53 = scmp.ne.s32.totalorder %s42, %s45
      %p54 = scmp.eq.s32.totalorder %s18, 63
      %p55 = por %p53, %p54
      %p56 = scmp.ne.s32.totalorder %s45, %s46
      %p57 = scmp.eq.s32.totalorder %s18, 0
      %p58 = por %p56, %p57
      %p59 = scmp.ne.s32.totalorder %s45, %s46
      %p60 = scmp.eq.s32.totalorder %s19, 63
      %p61 = por %p59, %p60
      %p63 = scmp.ne.s32.totalorder %s46, %s62
      %p64 = scmp.eq.s32.totalorder %s19, 0
      %p65 = por %p63, %p64
      %s66 = ssub.s32 %s21, %s35
      %p67 = scmp.eq.s32.totalorder %s66, 0
      %s69 = sadd.s32 %s68, 1
      %s70 = scalar_select %p67, %s68, %s69
      %p73 = pneg %p67
      %p74 = scmp.eq.s32.totalorder %s13, 63
      %p75 = por %p73, %p74
      %p76 = scmp.ne.s32.totalorder %s68, %s71
      %p77 = scmp.eq.s32.totalorder %s13, 0
      %p78 = por %p76, %p77
      %p79 = scmp.ne.s32.totalorder %s68, %s71
      %p80 = scmp.eq.s32.totalorder %s18, 63
      %p81 = por %p79, %p80
      %p82 = scmp.ne.s32.totalorder %s71, %s72
      %p83 = scmp.eq.s32.totalorder %s18, 0
      %p84 = por %p82, %p83
      %p85 = scmp.ne.s32.totalorder %s71, %s72
      %p86 = scmp.eq.s32.totalorder %s19, 63
      %p87 = por %p85, %p86
      %p89 = scmp.ne.s32.totalorder %s72, %s88
      %p90 = scmp.eq.s32.totalorder %s19, 0
      %p91 = por %p89, %p90
      %s92 = ssub.s32 %s21, %s35
      %p93 = scmp.eq.s32.totalorder %s92, 0
      %s95 = sadd.s32 %s94, 1
      %s96 = scalar_select %p93, %s94, %s95
      %p99 = pneg %p93
      %p100 = scmp.eq.s32.totalorder %s13, 63
      %p101 = por %p99, %p100
      %p102 = scmp.ne.s32.totalorder %s94, %s97
      %p103 = scmp.eq.s32.totalorder %s13, 0
      %p104 = por %p102, %p103
      %p105 = scmp.ne.s32.totalorder %s94, %s97
      %p106 = scmp.eq.s32.totalorder %s18, 63
      %p107 = por %p105, %p106
      %p108 = scmp.ne.s32.totalorder %s97, %s98
      %p109 = scmp.eq.s32.totalorder %s18, 0
      %p110 = por %p108, %p109
      %p111 = scmp.ne.s32.totalorder %s97, %s98
      %p112 = scmp.eq.s32.totalorder %s19, 63
      %p113 = por %p111, %p112
      %p115 = scmp.ne.s32.totalorder %s98, %s114
      %p116 = scmp.eq.s32.totalorder %s19, 0
      %p117 = por %p115, %p116
      %s118 = ssub.s32 %s21, %s35
      %p119 = scmp.eq.s32.totalorder %s118, 0
      %s121 = sadd.s32 %s120, 1
      %s122 = scalar_select %p119, %s120, %s121
      %p125 = pneg %p119
      %p126 = scmp.eq.s32.totalorder %s13, 63
      %p127 = por %p125, %p126
      %p128 = scmp.ne.s32.totalorder %s120, %s123
      %p129 = scmp.eq.s32.totalorder %s13, 0
      %p130 = por %p128, %p129
      %p131 = scmp.ne.s32.totalorder %s120, %s123
      %p132 = scmp.eq.s32.totalorder %s18, 63
      %p133 = por %p131, %p132
      %p134 = scmp.ne.s32.totalorder %s123, %s124
      %p135 = scmp.eq.s32.totalorder %s18, 0
      %p136 = por %p134, %p135
      %p137 = scmp.ne.s32.totalorder %s123, %s124
      %p138 = scmp.eq.s32.totalorder %s19, 63
      %p139 = por %p137, %p138
      %p141 = scmp.ne.s32.totalorder %s124, %s140
      %p142 = scmp.eq.s32.totalorder %s19, 0
      %p143 = por %p141, %p142
      %s144 = ssub.s32 %s20, %s39
      %s145 = ssub.s32 %s22, %s31
      %s146 = sor.u32 %s144, %s145
      %s147 = ssub.s32 %s21, %s35
      %s148 = sor.u32 %s146, %s147
      %p149 = scmp.eq.s32.totalorder %s148, 0
      %s151 = sadd.s32 %s150, 1
      %s152 = scalar_select %p149, %s150, %s151
      %p155 = pneg %p149
      %p156 = scmp.eq.s32.totalorder %s13, 63
      %p157 = por %p155, %p156
      %p158 = scmp.ne.s32.totalorder %s150, %s153
      %p159 = scmp.eq.s32.totalorder %s13, 0
      %p160 = por %p158, %p159
      %p161 = scmp.ne.s32.totalorder %s150, %s153
      %p162 = scmp.eq.s32.totalorder %s18, 63
      %p163 = por %p161, %p162
      %p164 = scmp.ne.s32.totalorder %s153, %s154
      %p165 = scmp.eq.s32.totalorder %s18, 0
      %p166 = por %p164, %p165
      %p167 = scmp.ne.s32.totalorder %s153, %s154
      %p168 = scmp.eq.s32.totalorder %s19, 63
      %p169 = por %p167, %p168
      %p171 = scmp.ne.s32.totalorder %s154, %s170
      %p172 = scmp.eq.s32.totalorder %s19, 0
      %p173 = por %p171, %p172
      %p174 = scmp.le.s32.totalorder 1, %s13
      %p175 = scmp.lt.s32.totalorder %s13, 65
      %p176 = pnand %p174, %p175
      %p177 = pneg %p176
      // Predicated region
      $region9: #{tpu_custom_call.1} parent=5 // pred_check
        _
      $region10: #{tpu_custom_call.1} parent=5 // pred_check_branch
        %179 = sbr.rel (%p176) target = $region12
      $region11: #{tpu_custom_call.1} parent=5 // pred_region
        %s180 = ssub.s32 %s13, 1
        // Predicated region
        $region13: #{tpu_custom_call.1} parent=11 // pred_check
          %p181 = pneg %p84
        $region14: #{tpu_custom_call.1} parent=11 // pred_check_branch
          %183 = sbr.rel (%p181) target = $region16
        $region15: #{tpu_custom_call.1} parent=11 // pred_region
          %p184 = scmp.lt.s32.totalorder %s24, 0
          %s185 = scalar_select %p184, %s24, 0
          %s186 = smul.addr %s185, 4
          %s187 = scalar_lea.vmem %s1, %s186
        $region16: #{tpu_custom_call.1} parent=11 // pred_fallthru
          _
        // Predicated region
        $region17: #{tpu_custom_call.1} parent=11 // pred_check
          %p188 = pneg %p110
        $region18: #{tpu_custom_call.1} parent=11 // pred_check_branch
          %190 = sbr.rel (%p188) target = $region20
        $region19: #{tpu_custom_call.1} parent=11 // pred_region
          %p191 = scmp.lt.s32.totalorder %s24, 0
          %s192 = scalar_select %p191, %s24, 0
          %s193 = scalar_lea.vmem %s2, %s192
        $region20: #{tpu_custom_call.1} parent=11 // pred_fallthru
          _
        // Predicated region
        $region21: #{tpu_custom_call.1} parent=11 // pred_check
          %p194 = pneg %p136
        $region22: #{tpu_custom_call.1} parent=11 // pred_check_branch
          %196 = sbr.rel (%p194) target = $region24
        $region23: #{tpu_custom_call.1} parent=11 // pred_region
          %p197 = scmp.lt.s32.totalorder %s24, 0
          %s198 = scalar_select %p197, %s24, 0
          %s199 = scalar_lea.vmem %s3, %s198
        $region24: #{tpu_custom_call.1} parent=11 // pred_fallthru
          _
      $region12: #{tpu_custom_call.1} parent=5 // pred_fallthru
        _
      %p200 = scmp.lt.s32.totalorder %s13, 64
      // Predicated region
      $region25: #{tpu_custom_call.1} parent=5 // pred_check
        %p201 = pneg %p200
      $region26: #{tpu_custom_call.1} parent=5 // pred_check_branch
        %203 = sbr.rel (%p201) target = $region28
      $region27: #{tpu_custom_call.1} parent=5 // pred_region
        // Predicated region
        $region29: #{tpu_custom_call.1} parent=27 // pred_check
          %p204 = pneg %p52
        $region30: #{tpu_custom_call.1} parent=27 // pred_check_branch
          %206 = sbr.rel (%p204) target = $region32
        $region31: #{tpu_custom_call.1} parent=27 // pred_region
          %p207 = scmp.lt.s32.totalorder %s20, 1
          %s208 = scalar_select %p207, %s20, 1
          %s209 = smul.addr %s208, 594
          %s210 = smul.addr %s209, 8
          %s211 = scalar_lea.vmem %s0, %s210
        $region32: #{tpu_custom_call.1} parent=27 // pred_fallthru
          _
      $region28: #{tpu_custom_call.1} parent=5 // pred_fallthru
        _
      %p212 = scmp.le.s32.totalorder 1, %s13
      %p213 = scmp.lt.s32.totalorder %s13, 65
      %p214 = pnand %p212, %p213
      %p215 = pneg %p214
      // Predicated region
      $region33: #{tpu_custom_call.1} parent=5 // pred_check
        _
      $region34: #{tpu_custom_call.1} parent=5 // pred_check_branch
        %217 = sbr.rel (%p214) target = $region36
      $region35: #{tpu_custom_call.1} parent=5 // pred_region
        %s218 = ssub.s32 %s13, 1
        %p219 = scmp.lt.s32.totalorder %s23, 1
        %s220 = scalar_select %p219, %s23, 1
        %s221 = smul.addr %s220, 594
        %s222 = smul.addr %s221, 8
        %s223 = scalar_lea.vmem %s0, %s222
        %p224 = pneg %p58
        %p225 = pneg %p55
        %p226 = scmp.lt.s32.totalorder %s24, 0
        %s227 = scalar_select %p226, %s24, 0
        %s228 = smul.addr %s227, 4
        %s229 = scalar_lea.vmem %s1, %s228
        %p230 = pneg %p84
        %p231 = pneg %p81
        %p232 = scmp.lt.s32.totalorder %s24, 0
        %s233 = scalar_select %p232, %s24, 0
        %s234 = scalar_lea.vmem %s2, %s233
        %p235 = pneg %p110
        %p236 = pneg %p107
        %p237 = scmp.lt.s32.totalorder %s24, 0
        %s238 = scalar_select %p237, %s24, 0
        %s239 = scalar_lea.vmem %s3, %s238
        %p240 = pneg %p136
        %p241 = pneg %p133
        %p242 = pneg %p166
        %p243 = pneg %p163
        %s244 = sand.u32 %s153, 1
        %s245 = scalar_lea.sflag [#allocation3], %s244
        %s246 = sand.u32 %s153, 1
        %s247 = smul.addr %s246, 32
        %s248 = scalar_lea.vmem [#allocation2], %s247
        %p249 = scmp.lt.s32.totalorder %s23, 1
        %s250 = scalar_select %p249, %s23, 1
        %s251 = smul.addr %s250, 594
        %s252 = smul.addr %s251, 8
        %s253 = scalar_lea.vmem %s0, %s252
        %p254 = scmp.lt.s32.totalorder %s24, 0
        %s255 = scalar_select %p254, %s24, 0
        %s256 = smul.addr %s255, 4
        %s257 = scalar_lea.vmem %s1, %s256
        %p258 = scmp.lt.s32.totalorder %s24, 0
        %s259 = scalar_select %p258, %s24, 0
        %s260 = scalar_lea.vmem %s2, %s259
        %p261 = scmp.lt.s32.totalorder %s24, 0
        %s262 = scalar_select %p261, %s24, 0
        %s263 = scalar_lea.vmem %s3, %s262
        %s264 = smul.u32 %s25, 2
        %s265 = smul.u32 %s264, 72
        %s266 = scalar_lea.vmem %s253, %s265
        %v267 = vld [vmem:[%s266] ss:$2 sm:$0xff]
        %s268 = scalar_lea.vmem %s266, 16
        %v269 = vld [vmem:[%s268] ss:$2 sm:$0xff]
        %s270 = scalar_lea.vmem %s266, 32
        %v271 = vld [vmem:[%s270] ss:$2 sm:$0xff]
        %s272 = scalar_lea.vmem %s266, 48
        %v273 = vld [vmem:[%s272] ss:$2 sm:$0xff]
        %v274 = vld [vmem:[%s257] sm:$0x7]
        %s275 = scalar_lea.vmem %s266, 1
        %v276 = vld [vmem:[%s275] ss:$2 sm:$0xff]
        %s277 = scalar_lea.vmem %s266, 17
        %v278 = vld [vmem:[%s277] ss:$2 sm:$0xff]
        %s279 = scalar_lea.vmem %s266, 33
        %v280 = vld [vmem:[%s279] ss:$2 sm:$0xff]
        %s281 = scalar_lea.vmem %s266, 49
        %v282 = vld [vmem:[%s281] ss:$2 sm:$0xff]
        %s283 = scalar_lea.vmem %s257, 4
        %v284 = vld [vmem:[%s283] sm:$0x7]
        %vm285 = vcmask 23552
        %v287 = vsel %vm285, %v276, 0
        %v290 = vsel %vm285, %v278, 0
        %v293 = vsel %vm285, %v280, 0
        %v296 = vsel %vm285, %v282, 0
        %vm298 = vcmask 1042432
        %v300 = vsel %vm298, %v284, 0
        %302 = vmatprep.subr.mxu0 0.0
        %303 = vmatpush1.msra.mxu0 %v300
        %304 = vmatprep.subr.mxu0 0.0
        %305 = vmatpush1.msra.mxu0 0.0
        %306 = vmatprep.subr.mxu0 0.0
        %307 = vmatpush1.msra.mxu0 0.0
        %308 = vmatprep.subr.mxu0 0.0
        %309 = vmatpush1.msra.mxu0 0.0
        %310 = vmatprep.subr.mxu0 0.0
        %311 = vmatpush1.msra.mxu0 0.0
        %312 = vmatprep.subr.mxu0 0.0
        %313 = vmatpush1.msra.mxu0 0.0
        %314 = vmatprep.subr.mxu0 0.0
        %315 = vmatpush1.msra.mxu0 0.0
        %316 = vmatprep.subr.mxu0 0.0
        %317 = vmatpush1.msra.mxu0 0.0
        %318 = vmatprep.subr.mxu0 0.0
        %319 = vmatpush1.msra.mxu0 0.0
        %320 = vmatprep.subr.mxu0 0.0
        %321 = vmatpush1.msra.mxu0 0.0
        %322 = vmatprep.subr.mxu0 0.0
        %323 = vmatpush1.msra.mxu0 0.0
        %324 = vmatprep.subr.mxu0 0.0
        %325 = vmatpush1.msra.mxu0 0.0
        %326 = vmatprep.subr.mxu0 0.0
        %327 = vmatpush1.msra.mxu0 0.0
        %328 = vmatprep.subr.mxu0 0.0
        %329 = vmatpush1.msra.mxu0 0.0
        %330 = vmatprep.subr.mxu0 0.0
        %331 = vmatpush1.msra.mxu0 0.0
        %332 = vmatprep.subr.mxu0 0.0
        %333 = vmatpush1.msra.mxu0 0.0
        %334 = vmatprep.subr.mxu0 0.0
        %335 = vmatpush1.msra.mxu0 0.0
        %336 = vmatprep.subr.mxu0 0.0
        %337 = vmatpush1.msra.mxu0 0.0
        %338 = vmatprep.subr.mxu0 0.0
        %339 = vmatpush1.msra.mxu0 0.0
        %340 = vmatprep.subr.mxu0 0.0
        %341 = vmatpush1.msra.mxu0 0.0
        %342 = vmatprep.subr.mxu0 0.0
        %343 = vmatpush1.msra.mxu0 0.0
        %344 = vmatprep.subr.mxu0 0.0
        %345 = vmatpush1.msra.mxu0 0.0
        %346 = vmatprep.subr.mxu0 0.0
        %347 = vmatpush1.msra.mxu0 0.0
        %348 = vmatprep.subr.mxu0 0.0
        %349 = vmatpush1.msra.mxu0 0.0
        %350 = vmatprep.subr.mxu0 0.0
        %351 = vmatpush1.msra.mxu0 0.0
        %352 = vmatprep.subr.mxu0 0.0
        %353 = vmatpush1.msra.mxu0 0.0
        %354 = vmatprep.subr.mxu0 0.0
        %355 = vmatpush1.msra.mxu0 0.0
        %356 = vmatprep.subr.mxu0 0.0
        %357 = vmatpush1.msra.mxu0 0.0
        %358 = vmatprep.subr.mxu0 0.0
        %359 = vmatpush1.msra.mxu0 0.0
        %360 = vmatprep.subr.mxu0 0.0
        %361 = vmatpush1.msra.mxu0 0.0
        %362 = vmatprep.subr.mxu0 0.0
        %363 = vmatpush1.msra.mxu0 0.0
        %364 = vmatprep.subr.mxu0 0.0
        %365 = vmatpush1.msra.mxu0 0.0
        %366 = vmatprep.mubr.f32.mxu0 0.0
        %367 = vmatmul.mubr.f32.gmra.mrb[0].mxu0 %v287
        %v368 = vpop.f32.mrb[0].mxu0
        %v369 = vadd.f32 0.0, %v368
        %v370 = vpop.f32.mrb[0].mxu0
        %371 = vmatprep.mubr.f32.mxu0 0.0
        %372 = vmatmul.mubr.f32.gmra.mrb[0].mxu0 %v290
        %v373 = vpop.f32.mrb[0].mxu0
        %v374 = vadd.f32 0.0, %v373
        %v375 = vpop.f32.mrb[0].mxu0
        %376 = vmatprep.mubr.f32.mxu0 0.0
        %377 = vmatmul.mubr.f32.gmra.mrb[0].mxu0 %v293
        %v378 = vpop.f32.mrb[0].mxu0
        %v379 = vadd.f32 0.0, %v378
        %v380 = vpop.f32.mrb[0].mxu0
        %381 = vmatprep.mubr.f32.mxu0 0.0
        %382 = vmatmul.mubr.f32.gmra.mrb[0].mxu0 %v296
        %v383 = vpop.f32.mrb[0].mxu0
        %v384 = vadd.f32 0.0, %v383
        %v385 = vpop.f32.mrb[0].mxu0
        %386 = vdwg.mxu0
        %v388 = vsel %vm285, %v267, 0
        %v391 = vsel %vm285, %v269, 0
        %v394 = vsel %vm285, %v271, 0
        %v397 = vsel %vm285, %v273, 0
        %v400 = vsel %vm298, %v274, 0
        %402 = vmatprep.subr.mxu0 0.0
        %403 = vmatpush1.msra.mxu0 %v400
        %404 = vmatprep.subr.mxu0 0.0
        %405 = vmatpush1.msra.mxu0 0.0
        %406 = vmatprep.subr.mxu0 0.0
        %407 = vmatpush1.msra.mxu0 0.0
        %408 = vmatprep.subr.mxu0 0.0
        %409 = vmatpush1.msra.mxu0 0.0
        %410 = vmatprep.subr.mxu0 0.0
        %411 = vmatpush1.msra.mxu0 0.0
        %412 = vmatprep.subr.mxu0 0.0
        %413 = vmatpush1.msra.mxu0 0.0
        %414 = vmatprep.subr.mxu0 0.0
        %415 = vmatpush1.msra.mxu0 0.0
        %416 = vmatprep.subr.mxu0 0.0
        %417 = vmatpush1.msra.mxu0 0.0
        %418 = vmatprep.subr.mxu0 0.0
        %419 = vmatpush1.msra.mxu0 0.0
        %420 = vmatprep.subr.mxu0 0.0
        %421 = vmatpush1.msra.mxu0 0.0
        %422 = vmatprep.subr.mxu0 0.0
        %423 = vmatpush1.msra.mxu0 0.0
        %424 = vmatprep.subr.mxu0 0.0
        %425 = vmatpush1.msra.mxu0 0.0
        %426 = vmatprep.subr.mxu0 0.0
        %427 = vmatpush1.msra.mxu0 0.0
        %428 = vmatprep.subr.mxu0 0.0
        %429 = vmatpush1.msra.mxu0 0.0
        %430 = vmatprep.subr.mxu0 0.0
        %431 = vmatpush1.msra.mxu0 0.0
        %432 = vmatprep.subr.mxu0 0.0
        %433 = vmatpush1.msra.mxu0 0.0
        %434 = vmatprep.subr.mxu0 0.0
        %435 = vmatpush1.msra.mxu0 0.0
        %436 = vmatprep.subr.mxu0 0.0
        %437 = vmatpush1.msra.mxu0 0.0
        %438 = vmatprep.subr.mxu0 0.0
        %439 = vmatpush1.msra.mxu0 0.0
        %440 = vmatprep.subr.mxu0 0.0
        %441 = vmatpush1.msra.mxu0 0.0
        %442 = vmatprep.subr.mxu0 0.0
        %443 = vmatpush1.msra.mxu0 0.0
        %444 = vmatprep.subr.mxu0 0.0
        %445 = vmatpush1.msra.mxu0 0.0
        %446 = vmatprep.subr.mxu0 0.0
        %447 = vmatpush1.msra.mxu0 0.0
        %448 = vmatprep.subr.mxu0 0.0
        %449 = vmatpush1.msra.mxu0 0.0
        %450 = vmatprep.subr.mxu0 0.0
        %451 = vmatpush1.msra.mxu0 0.0
        %452 = vmatprep.subr.mxu0 0.0
        %453 = vmatpush1.msra.mxu0 0.0
        %454 = vmatprep.subr.mxu0 0.0
        %455 = vmatpush1.msra.mxu0 0.0
        %456 = vmatprep.subr.mxu0 0.0
        %457 = vmatpush1.msra.mxu0 0.0
        %458 = vmatprep.subr.mxu0 0.0
        %459 = vmatpush1.msra.mxu0 0.0
        %460 = vmatprep.subr.mxu0 0.0
        %461 = vmatpush1.msra.mxu0 0.0
        %462 = vmatprep.subr.mxu0 0.0
        %463 = vmatpush1.msra.mxu0 0.0
        %464 = vmatprep.subr.mxu0 0.0
        %465 = vmatpush1.msra.mxu0 0.0
        %466 = vmatprep.mubr.f32.mxu0 0.0
        %467 = vmatmul.mubr.f32.gmra.mrb[0].mxu0 %v388
        %v468 = vpop.f32.mrb[0].mxu0
        %v469 = vadd.f32 %v369, %v468
        %v470 = vpop.f32.mrb[0].mxu0
        %471 = vmatprep.mubr.f32.mxu0 0.0
        %472 = vmatmul.mubr.f32.gmra.mrb[0].mxu0 %v391
        %v473 = vpop.f32.mrb[0].mxu0
        %v474 = vadd.f32 %v374, %v473
        %v475 = vpop.f32.mrb[0].mxu0
        %476 = vmatprep.mubr.f32.mxu0 0.0
        %477 = vmatmul.mubr.f32.gmra.mrb[0].mxu0 %v394
        %v478 = vpop.f32.mrb[0].mxu0
        %v479 = vadd.f32 %v379, %v478
        %v480 = vpop.f32.mrb[0].mxu0
        %481 = vmatprep.mubr.f32.mxu0 0.0
        %482 = vmatmul.mubr.f32.gmra.mrb[0].mxu0 %v397
        %v483 = vpop.f32.mrb[0].mxu0
        %v484 = vadd.f32 %v384, %v483
        %v485 = vpop.f32.mrb[0].mxu0
        %486 = vdwg.mxu0
        %s487 = scalar_lea.vmem %s266, 2
        %v488 = vld [vmem:[%s487] ss:$2 sm:$0xff]
        %s489 = scalar_lea.vmem %s266, 18
        %v490 = vld [vmem:[%s489] ss:$2 sm:$0xff]
        %s491 = scalar_lea.vmem %s266, 34
        %v492 = vld [vmem:[%s491] ss:$2 sm:$0xff]
        %s493 = scalar_lea.vmem %s266, 50
        %v494 = vld [vmem:[%s493] ss:$2 sm:$0xff]
        %s495 = scalar_lea.vmem %s257, 8
        %v496 = vld [vmem:[%s495] sm:$0x7]
        %v498 = vsel %vm285, %v488, 0
        %v501 = vsel %vm285, %v490, 0
        %v504 = vsel %vm285, %v492, 0
        %v507 = vsel %vm285, %v494, 0
        %v510 = vsel %vm298, %v496, 0
        %512 = vmatprep.subr.mxu0 0.0
        %513 = vmatpush1.msra.mxu0 %v510
        %514 = vmatprep.subr.mxu0 0.0
        %515 = vmatpush1.msra.mxu0 0.0
        %516 = vmatprep.subr.mxu0 0.0
        %517 = vmatpush1.msra.mxu0 0.0
        %518 = vmatprep.subr.mxu0 0.0
        %519 = vmatpush1.msra.mxu0 0.0
        %520 = vmatprep.subr.mxu0 0.0
        %521 = vmatpush1.msra.mxu0 0.0
        %522 = vmatprep.subr.mxu0 0.0
        %523 = vmatpush1.msra.mxu0 0.0
        %524 = vmatprep.subr.mxu0 0.0
        %525 = vmatpush1.msra.mxu0 0.0
        %526 = vmatprep.subr.mxu0 0.0
        %527 = vmatpush1.msra.mxu0 0.0
        %528 = vmatprep.subr.mxu0 0.0
        %529 = vmatpush1.msra.mxu0 0.0
        %530 = vmatprep.subr.mxu0 0.0
        %531 = vmatpush1.msra.mxu0 0.0
        %532 = vmatprep.subr.mxu0 0.0
        %533 = vmatpush1.msra.mxu0 0.0
        %534 = vmatprep.subr.mxu0 0.0
        %535 = vmatpush1.msra.mxu0 0.0
        %536 = vmatprep.subr.mxu0 0.0
        %537 = vmatpush1.msra.mxu0 0.0
        %538 = vmatprep.subr.mxu0 0.0
        %539 = vmatpush1.msra.mxu0 0.0
        %540 = vmatprep.subr.mxu0 0.0
        %541 = vmatpush1.msra.mxu0 0.0
        %542 = vmatprep.subr.mxu0 0.0
        %543 = vmatpush1.msra.mxu0 0.0
        %544 = vmatprep.subr.mxu0 0.0
        %545 = vmatpush1.msra.mxu0 0.0
        %546 = vmatprep.subr.mxu0 0.0
        %547 = vmatpush1.msra.mxu0 0.0
        %548 = vmatprep.subr.mxu0 0.0
        %549 = vmatpush1.msra.mxu0 0.0
        %550 = vmatprep.subr.mxu0 0.0
        %551 = vmatpush1.msra.mxu0 0.0
        %552 = vmatprep.subr.mxu0 0.0
        %553 = vmatpush1.msra.mxu0 0.0
        %554 = vmatprep.subr.mxu0 0.0
        %555 = vmatpush1.msra.mxu0 0.0
        %556 = vmatprep.subr.mxu0 0.0
        %557 = vmatpush1.msra.mxu0 0.0
        %558 = vmatprep.subr.mxu0 0.0
        %559 = vmatpush1.msra.mxu0 0.0
        %560 = vmatprep.subr.mxu0 0.0
        %561 = vmatpush1.msra.mxu0 0.0
        %562 = vmatprep.subr.mxu0 0.0
        %563 = vmatpush1.msra.mxu0 0.0
        %564 = vmatprep.subr.mxu0 0.0
        %565 = vmatpush1.msra.mxu0 0.0
        %566 = vmatprep.subr.mxu0 0.0
        %567 = vmatpush1.msra.mxu0 0.0
        %568 = vmatprep.subr.mxu0 0.0
        %569 = vmatpush1.msra.mxu0 0.0
        %570 = vmatprep.subr.mxu0 0.0
        %571 = vmatpush1.msra.mxu0 0.0
        %572 = vmatprep.subr.mxu0 0.0
        %573 = vmatpush1.msra.mxu0 0.0
        %574 = vmatprep.subr.mxu0 0.0
        %575 = vmatpush1.msra.mxu0 0.0
        %576 = vmatprep.mubr.f32.mxu0 0.0
        %577 = vmatmul.mubr.f32.gmra.mrb[0].mxu0 %v498
        %v578 = vpop.f32.mrb[0].mxu0
        %v579 = vadd.f32 0.0, %v578
        %v580 = vpop.f32.mrb[0].mxu0
        %581 = vmatprep.mubr.f32.mxu0 0.0
        %582 = vmatmul.mubr.f32.gmra.mrb[0].mxu0 %v501
        %v583 = vpop.f32.mrb[0].mxu0
        %v584 = vadd.f32 0.0, %v583
        %v585 = vpop.f32.mrb[0].mxu0
        %586 = vmatprep.mubr.f32.mxu0 0.0
        %587 = vmatmul.mubr.f32.gmra.mrb[0].mxu0 %v504
        %v588 = vpop.f32.mrb[0].mxu0
        %v589 = vadd.f32 0.0, %v588
        %v590 = vpop.f32.mrb[0].mxu0
        %591 = vmatprep.mubr.f32.mxu0 0.0
        %592 = vmatmul.mubr.f32.gmra.mrb[0].mxu0 %v507
        %v593 = vpop.f32.mrb[0].mxu0
        %v594 = vadd.f32 0.0, %v593
        %v595 = vpop.f32.mrb[0].mxu0
        %596 = vdwg.mxu0
        %v597 = vadd.f32 %v469, %v579
        %v598 = vadd.f32 %v474, %v584
        %v599 = vadd.f32 %v479, %v589
        %v600 = vadd.f32 %v484, %v594
        %s601 = scalar_lea.vmem %s266, 3
        %v602 = vld [vmem:[%s601] ss:$2 sm:$0xff]
        %s603 = scalar_lea.vmem %s266, 19
        %v604 = vld [vmem:[%s603] ss:$2 sm:$0xff]
        %s605 = scalar_lea.vmem %s266, 35
        %v606 = vld [vmem:[%s605] ss:$2 sm:$0xff]
        %s607 = scalar_lea.vmem %s266, 51
        %v608 = vld [vmem:[%s607] ss:$2 sm:$0xff]
        %s609 = scalar_lea.vmem %s257, 12
        %v610 = vld [vmem:[%s609] sm:$0x7]
        %v612 = vsel %vm285, %v602, 0
        %v615 = vsel %vm285, %v604, 0
        %v618 = vsel %vm285, %v606, 0
        %v621 = vsel %vm285, %v608, 0
        %v624 = vsel %vm298, %v610, 0
        %626 = vmatprep.subr.mxu0 0.0
        %627 = vmatpush1.msra.mxu0 %v624
        %628 = vmatprep.subr.mxu0 0.0
        %629 = vmatpush1.msra.mxu0 0.0
        %630 = vmatprep.subr.mxu0 0.0
        %631 = vmatpush1.msra.mxu0 0.0
        %632 = vmatprep.subr.mxu0 0.0
        %633 = vmatpush1.msra.mxu0 0.0
        %634 = vmatprep.subr.mxu0 0.0
        %635 = vmatpush1.msra.mxu0 0.0
        %636 = vmatprep.subr.mxu0 0.0
        %637 = vmatpush1.msra.mxu0 0.0
        %638 = vmatprep.subr.mxu0 0.0
        %639 = vmatpush1.msra.mxu0 0.0
        %640 = vmatprep.subr.mxu0 0.0
        %641 = vmatpush1.msra.mxu0 0.0
        %642 = vmatprep.subr.mxu0 0.0
        %643 = vmatpush1.msra.mxu0 0.0
        %644 = vmatprep.subr.mxu0 0.0
        %645 = vmatpush1.msra.mxu0 0.0
        %646 = vmatprep.subr.mxu0 0.0
        %647 = vmatpush1.msra.mxu0 0.0
        %648 = vmatprep.subr.mxu0 0.0
        %649 = vmatpush1.msra.mxu0 0.0
        %650 = vmatprep.subr.mxu0 0.0
        %651 = vmatpush1.msra.mxu0 0.0
        %652 = vmatprep.subr.mxu0 0.0
        %653 = vmatpush1.msra.mxu0 0.0
        %654 = vmatprep.subr.mxu0 0.0
        %655 = vmatpush1.msra.mxu0 0.0
        %656 = vmatprep.subr.mxu0 0.0
        %657 = vmatpush1.msra.mxu0 0.0
        %658 = vmatprep.subr.mxu0 0.0
        %659 = vmatpush1.msra.mxu0 0.0
        %660 = vmatprep.subr.mxu0 0.0
        %661 = vmatpush1.msra.mxu0 0.0
        %662 = vmatprep.subr.mxu0 0.0
        %663 = vmatpush1.msra.mxu0 0.0
        %664 = vmatprep.subr.mxu0 0.0
        %665 = vmatpush1.msra.mxu0 0.0
        %666 = vmatprep.subr.mxu0 0.0
        %667 = vmatpush1.msra.mxu0 0.0
        %668 = vmatprep.subr.mxu0 0.0
        %669 = vmatpush1.msra.mxu0 0.0
        %670 = vmatprep.subr.mxu0 0.0
        %671 = vmatpush1.msra.mxu0 0.0
        %672 = vmatprep.subr.mxu0 0.0
        %673 = vmatpush1.msra.mxu0 0.0
        %674 = vmatprep.subr.mxu0 0.0
        %675 = vmatpush1.msra.mxu0 0.0
        %676 = vmatprep.subr.mxu0 0.0
        %677 = vmatpush1.msra.mxu0 0.0
        %678 = vmatprep.subr.mxu0 0.0
        %679 = vmatpush1.msra.mxu0 0.0
        %680 = vmatprep.subr.mxu0 0.0
        %681 = vmatpush1.msra.mxu0 0.0
        %682 = vmatprep.subr.mxu0 0.0
        %683 = vmatpush1.msra.mxu0 0.0
        %684 = vmatprep.subr.mxu0 0.0
        %685 = vmatpush1.msra.mxu0 0.0
        %686 = vmatprep.subr.mxu0 0.0
        %687 = vmatpush1.msra.mxu0 0.0
        %688 = vmatprep.subr.mxu0 0.0
        %689 = vmatpush1.msra.mxu0 0.0
        %690 = vmatprep.mubr.f32.mxu0 0.0
        %691 = vmatmul.mubr.f32.gmra.mrb[0].mxu0 %v612
        %v692 = vpop.f32.mrb[0].mxu0
        %v693 = vadd.f32 0.0, %v692
        %v694 = vpop.f32.mrb[0].mxu0
        %695 = vmatprep.mubr.f32.mxu0 0.0
        %696 = vmatmul.mubr.f32.gmra.mrb[0].mxu0 %v615
        %v697 = vpop.f32.mrb[0].mxu0
        %v698 = vadd.f32 0.0, %v697
        %v699 = vpop.f32.mrb[0].mxu0
        %700 = vmatprep.mubr.f32.mxu0 0.0
        %701 = vmatmul.mubr.f32.gmra.mrb[0].mxu0 %v618
        %v702 = vpop.f32.mrb[0].mxu0
        %v703 = vadd.f32 0.0, %v702
        %v704 = vpop.f32.mrb[0].mxu0
        %705 = vmatprep.mubr.f32.mxu0 0.0
        %706 = vmatmul.mubr.f32.gmra.mrb[0].mxu0 %v621
        %v707 = vpop.f32.mrb[0].mxu0
        %v708 = vadd.f32 0.0, %v707
        %v709 = vpop.f32.mrb[0].mxu0
        %710 = vdwg.mxu0
        %v711 = vadd.f32 %v597, %v693
        %v712 = vadd.f32 %v598, %v698
        %v713 = vadd.f32 %v599, %v703
        %v714 = vadd.f32 %v600, %v708
        %s715 = sadd.s32 %s264, 1
        %s716 = smul.u32 %s715, 72
        %s717 = scalar_lea.vmem %s253, %s716
        %v718 = vld [vmem:[%s717] ss:$2 sm:$0xff]
        %s719 = scalar_lea.vmem %s717, 16
        %v720 = vld [vmem:[%s719] ss:$2 sm:$0xff]
        %s721 = scalar_lea.vmem %s717, 32
        %v722 = vld [vmem:[%s721] ss:$2 sm:$0xff]
        %s723 = scalar_lea.vmem %s717, 48
        %v724 = vld [vmem:[%s723] ss:$2 sm:$0xff]
        %s725 = scalar_lea.vmem %s257, 16
        %v726 = vld [vmem:[%s725] sm:$0x7]
        %v728 = vsel %vm285, %v718, 0
        %v731 = vsel %vm285, %v720, 0
        %v734 = vsel %vm285, %v722, 0
        %v737 = vsel %vm285, %v724, 0
        %v740 = vsel %vm298, %v726, 0
        %742 = vmatprep.subr.mxu0 0.0
        %743 = vmatpush1.msra.mxu0 %v740
        %744 = vmatprep.subr.mxu0 0.0
        %745 = vmatpush1.msra.mxu0 0.0
        %746 = vmatprep.subr.mxu0 0.0
        %747 = vmatpush1.msra.mxu0 0.0
        %748 = vmatprep.subr.mxu0 0.0
        %749 = vmatpush1.msra.mxu0 0.0
        %750 = vmatprep.subr.mxu0 0.0
        %751 = vmatpush1.msra.mxu0 0.0
        %752 = vmatprep.subr.mxu0 0.0
        %753 = vmatpush1.msra.mxu0 0.0
        %754 = vmatprep.subr.mxu0 0.0
        %755 = vmatpush1.msra.mxu0 0.0
        %756 = vmatprep.subr.mxu0 0.0
        %757 = vmatpush1.msra.mxu0 0.0
        %758 = vmatprep.subr.mxu0 0.0
        %759 = vmatpush1.msra.mxu0 0.0
        %760 = vmatprep.subr.mxu0 0.0
        %761 = vmatpush1.msra.mxu0 0.0
        %762 = vmatprep.subr.mxu0 0.0
        %763 = vmatpush1.msra.mxu0 0.0
        %764 = vmatprep.subr.mxu0 0.0
        %765 = vmatpush1.msra.mxu0 0.0
        %766 = vmatprep.subr.mxu0 0.0
        %767 = vmatpush1.msra.mxu0 0.0
        %768 = vmatprep.subr.mxu0 0.0
        %769 = vmatpush1.msra.mxu0 0.0
        %770 = vmatprep.subr.mxu0 0.0
        %771 = vmatpush1.msra.mxu0 0.0
        %772 = vmatprep.subr.mxu0 0.0
        %773 = vmatpush1.msra.mxu0 0.0
        %774 = vmatprep.subr.mxu0 0.0
        %775 = vmatpush1.msra.mxu0 0.0
        %776 = vmatprep.subr.mxu0 0.0
        %777 = vmatpush1.msra.mxu0 0.0
        %778 = vmatprep.subr.mxu0 0.0
        %779 = vmatpush1.msra.mxu0 0.0
        %780 = vmatprep.subr.mxu0 0.0
        %781 = vmatpush1.msra.mxu0 0.0
        %782 = vmatprep.subr.mxu0 0.0
        %783 = vmatpush1.msra.mxu0 0.0
        %784 = vmatprep.subr.mxu0 0.0
        %785 = vmatpush1.msra.mxu0 0.0
        %786 = vmatprep.subr.mxu0 0.0
        %787 = vmatpush1.msra.mxu0 0.0
        %788 = vmatprep.subr.mxu0 0.0
        %789 = vmatpush1.msra.mxu0 0.0
        %790 = vmatprep.subr.mxu0 0.0
        %791 = vmatpush1.msra.mxu0 0.0
        %792 = vmatprep.subr.mxu0 0.0
        %793 = vmatpush1.msra.mxu0 0.0
        %794 = vmatprep.subr.mxu0 0.0
        %795 = vmatpush1.msra.mxu0 0.0
        %796 = vmatprep.subr.mxu0 0.0
        %797 = vmatpush1.msra.mxu0 0.0
        %798 = vmatprep.subr.mxu0 0.0
        %799 = vmatpush1.msra.mxu0 0.0
        %800 = vmatprep.subr.mxu0 0.0
        %801 = vmatpush1.msra.mxu0 0.0
        %802 = vmatprep.subr.mxu0 0.0
        %803 = vmatpush1.msra.mxu0 0.0
        %804 = vmatprep.subr.mxu0 0.0
        %805 = vmatpush1.msra.mxu0 0.0
        %806 = vmatprep.mubr.f32.mxu0 0.0
        %807 = vmatmul.mubr.f32.gmra.mrb[0].mxu0 %v728
        %v808 = vpop.f32.mrb[0].mxu0
        %v809 = vadd.f32 0.0, %v808
        %v810 = vpop.f32.mrb[0].mxu0
        %811 = vmatprep.mubr.f32.mxu0 0.0
        %812 = vmatmul.mubr.f32.gmra.mrb[0].mxu0 %v731
        %v813 = vpop.f32.mrb[0].mxu0
        %v814 = vadd.f32 0.0, %v813
        %v815 = vpop.f32.mrb[0].mxu0
        %816 = vmatprep.mubr.f32.mxu0 0.0
        %817 = vmatmul.mubr.f32.gmra.mrb[0].mxu0 %v734
        %v818 = vpop.f32.mrb[0].mxu0
        %v819 = vadd.f32 0.0, %v818
        %v820 = vpop.f32.mrb[0].mxu0
        %821 = vmatprep.mubr.f32.mxu0 0.0
        %822 = vmatmul.mubr.f32.gmra.mrb[0].mxu0 %v737
        %v823 = vpop.f32.mrb[0].mxu0
        %v824 = vadd.f32 0.0, %v823
        %v825 = vpop.f32.mrb[0].mxu0
        %826 = vdwg.mxu0
        %v827 = vadd.f32 %v711, %v809
        %v828 = vadd.f32 %v712, %v814
        %v829 = vadd.f32 %v713, %v819
        %v830 = vadd.f32 %v714, %v824
        %s831 = scalar_lea.vmem %s717, 1
        %v832 = vld [vmem:[%s831] ss:$2 sm:$0xff]
        %s833 = scalar_lea.vmem %s717, 17
        %v834 = vld [vmem:[%s833] ss:$2 sm:$0xff]
        %s835 = scalar_lea.vmem %s717, 33
        %v836 = vld [vmem:[%s835] ss:$2 sm:$0xff]
        %s837 = scalar_lea.vmem %s717, 49
        %v838 = vld [vmem:[%s837] ss:$2 sm:$0xff]
        %s839 = scalar_lea.vmem %s257, 20
        %v840 = vld [vmem:[%s839] sm:$0x7]
        %v842 = vsel %vm285, %v832, 0
        %v845 = vsel %vm285, %v834, 0
        %v848 = vsel %vm285, %v836, 0
        %v851 = vsel %vm285, %v838, 0
        %v854 = vsel %vm298, %v840, 0
        %856 = vmatprep.subr.mxu0 0.0
        %857 = vmatpush1.msra.mxu0 %v854
        %858 = vmatprep.subr.mxu0 0.0
        %859 = vmatpush1.msra.mxu0 0.0
        %860 = vmatprep.subr.mxu0 0.0
        %861 = vmatpush1.msra.mxu0 0.0
        %862 = vmatprep.subr.mxu0 0.0
        %863 = vmatpush1.msra.mxu0 0.0
        %864 = vmatprep.subr.mxu0 0.0
        %865 = vmatpush1.msra.mxu0 0.0
        %866 = vmatprep.subr.mxu0 0.0
        %867 = vmatpush1.msra.mxu0 0.0
        %868 = vmatprep.subr.mxu0 0.0
        %869 = vmatpush1.msra.mxu0 0.0
        %870 = vmatprep.subr.mxu0 0.0
        %871 = vmatpush1.msra.mxu0 0.0
        %872 = vmatprep.subr.mxu0 0.0
        %873 = vmatpush1.msra.mxu0 0.0
        %874 = vmatprep.subr.mxu0 0.0
        %875 = vmatpush1.msra.mxu0 0.0
        %876 = vmatprep.subr.mxu0 0.0
        %877 = vmatpush1.msra.mxu0 0.0
        %878 = vmatprep.subr.mxu0 0.0
        %879 = vmatpush1.msra.mxu0 0.0
        %880 = vmatprep.subr.mxu0 0.0
        %881 = vmatpush1.msra.mxu0 0.0
        %882 = vmatprep.subr.mxu0 0.0
        %883 = vmatpush1.msra.mxu0 0.0
        %884 = vmatprep.subr.mxu0 0.0
        %885 = vmatpush1.msra.mxu0 0.0
        %886 = vmatprep.subr.mxu0 0.0
        %887 = vmatpush1.msra.mxu0 0.0
        %888 = vmatprep.subr.mxu0 0.0
        %889 = vmatpush1.msra.mxu0 0.0
        %890 = vmatprep.subr.mxu0 0.0
        %891 = vmatpush1.msra.mxu0 0.0
        %892 = vmatprep.subr.mxu0 0.0
        %893 = vmatpush1.msra.mxu0 0.0
        %894 = vmatprep.subr.mxu0 0.0
        %895 = vmatpush1.msra.mxu0 0.0
        %896 = vmatprep.subr.mxu0 0.0
        %897 = vmatpush1.msra.mxu0 0.0
        %898 = vmatprep.subr.mxu0 0.0
        %899 = vmatpush1.msra.mxu0 0.0
        %900 = vmatprep.subr.mxu0 0.0
        %901 = vmatpush1.msra.mxu0 0.0
        %902 = vmatprep.subr.mxu0 0.0
        %903 = vmatpush1.msra.mxu0 0.0
        %904 = vmatprep.subr.mxu0 0.0
        %905 = vmatpush1.msra.mxu0 0.0
        %906 = vmatprep.subr.mxu0 0.0
        %907 = vmatpush1.msra.mxu0 0.0
        %908 = vmatprep.subr.mxu0 0.0
        %909 = vmatpush1.msra.mxu0 0.0
        %910 = vmatprep.subr.mxu0 0.0
        %911 = vmatpush1.msra.mxu0 0.0
        %912 = vmatprep.subr.mxu0 0.0
        %913 = vmatpush1.msra.mxu0 0.0
        %914 = vmatprep.subr.mxu0 0.0
        %915 = vmatpush1.msra.mxu0 0.0
        %916 = vmatprep.subr.mxu0 0.0
        %917 = vmatpush1.msra.mxu0 0.0
        %918 = vmatprep.subr.mxu0 0.0
        %919 = vmatpush1.msra.mxu0 0.0
        %920 = vmatprep.mubr.f32.mxu0 0.0
        %921 = vmatmul.mubr.f32.gmra.mrb[0].mxu0 %v842
        %v922 = vpop.f32.mrb[0].mxu0
        %v923 = vadd.f32 0.0, %v922
        %v924 = vpop.f32.mrb[0].mxu0
        %925 = vmatprep.mubr.f32.mxu0 0.0
        %926 = vmatmul.mubr.f32.gmra.mrb[0].mxu0 %v845
        %v927 = vpop.f32.mrb[0].mxu0
        %v928 = vadd.f32 0.0, %v927
        %v929 = vpop.f32.mrb[0].mxu0
        %930 = vmatprep.mubr.f32.mxu0 0.0
        %931 = vmatmul.mubr.f32.gmra.mrb[0].mxu0 %v848
        %v932 = vpop.f32.mrb[0].mxu0
        %v933 = vadd.f32 0.0, %v932
        %v934 = vpop.f32.mrb[0].mxu0
        %935 = vmatprep.mubr.f32.mxu0 0.0
        %936 = vmatmul.mubr.f32.gmra.mrb[0].mxu0 %v851
        %v937 = vpop.f32.mrb[0].mxu0
        %v938 = vadd.f32 0.0, %v937
        %v939 = vpop.f32.mrb[0].mxu0
        %940 = vdwg.mxu0
        %v941 = vadd.f32 %v827, %v923
        %v942 = vadd.f32 %v828, %v928
        %v943 = vadd.f32 %v829, %v933
        %v944 = vadd.f32 %v830, %v938
        %s945 = scalar_lea.vmem %s717, 2
        %v946 = vld [vmem:[%s945] ss:$2 sm:$0xff]
        %s947 = scalar_lea.vmem %s717, 18
        %v948 = vld [vmem:[%s947] ss:$2 sm:$0xff]
        %s949 = scalar_lea.vmem %s717, 34
        %v950 = vld [vmem:[%s949] ss:$2 sm:$0xff]
        %s951 = scalar_lea.vmem %s717, 50
        %v952 = vld [vmem:[%s951] ss:$2 sm:$0xff]
        %s953 = scalar_lea.vmem %s257, 24
        %v954 = vld [vmem:[%s953] sm:$0x7]
        %v956 = vsel %vm285, %v946, 0
        %v959 = vsel %vm285, %v948, 0
        %v962 = vsel %vm285, %v950, 0
        %v965 = vsel %vm285, %v952, 0
        %v968 = vsel %vm298, %v954, 0
        %970 = vmatprep.subr.mxu0 0.0
        %971 = vmatpush1.msra.mxu0 %v968
        %972 = vmatprep.subr.mxu0 0.0
        %973 = vmatpush1.msra.mxu0 0.0
        %974 = vmatprep.subr.mxu0 0.0
        %975 = vmatpush1.msra.mxu0 0.0
        %976 = vmatprep.subr.mxu0 0.0
        %977 = vmatpush1.msra.mxu0 0.0
        %978 = vmatprep.subr.mxu0 0.0
        %979 = vmatpush1.msra.mxu0 0.0
        %980 = vmatprep.subr.mxu0 0.0
        %981 = vmatpush1.msra.mxu0 0.0
        %982 = vmatprep.subr.mxu0 0.0
        %983 = vmatpush1.msra.mxu0 0.0
        %984 = vmatprep.subr.mxu0 0.0
        %985 = vmatpush1.msra.mxu0 0.0
        %986 = vmatprep.subr.mxu0 0.0
        %987 = vmatpush1.msra.mxu0 0.0
        %988 = vmatprep.subr.mxu0 0.0
        %989 = vmatpush1.msra.mxu0 0.0
        %990 = vmatprep.subr.mxu0 0.0
        %991 = vmatpush1.msra.mxu0 0.0
        %992 = vmatprep.subr.mxu0 0.0
        %993 = vmatpush1.msra.mxu0 0.0
        %994 = vmatprep.subr.mxu0 0.0
        %995 = vmatpush1.msra.mxu0 0.0
        %996 = vmatprep.subr.mxu0 0.0
        %997 = vmatpush1.msra.mxu0 0.0
        %998 = vmatprep.subr.mxu0 0.0
        %999 = vmatpush1.msra.mxu0 0.0
        %1000 = vmatprep.subr.mxu0 0.0
        %1001 = vmatpush1.msra.mxu0 0.0
        %1002 = vmatprep.subr.mxu0 0.0
        %1003 = vmatpush1.msra.mxu0 0.0
        %1004 = vmatprep.subr.mxu0 0.0
        %1005 = vmatpush1.msra.mxu0 0.0
        %1006 = vmatprep.subr.mxu0 0.0
        %1007 = vmatpush1.msra.mxu0 0.0
        %1008 = vmatprep.subr.mxu0 0.0
        %1009 = vmatpush1.msra.mxu0 0.0
        %1010 = vmatprep.subr.mxu0 0.0
        %1011 = vmatpush1.msra.mxu0 0.0
        %1012 = vmatprep.subr.mxu0 0.0
        %1013 = vmatpush1.msra.mxu0 0.0
        %1014 = vmatprep.subr.mxu0 0.0
        %1015 = vmatpush1.msra.mxu0 0.0
        %1016 = vmatprep.subr.mxu0 0.0
        %1017 = vmatpush1.msra.mxu0 0.0
        %1018 = vmatprep.subr.mxu0 0.0
        %1019 = vmatpush1.msra.mxu0 0.0
        %1020 = vmatprep.subr.mxu0 0.0
        %1021 = vmatpush1.msra.mxu0 0.0
        %1022 = vmatprep.subr.mxu0 0.0
        %1023 = vmatpush1.msra.mxu0 0.0
        %1024 = vmatprep.subr.mxu0 0.0
        %1025 = vmatpush1.msra.mxu0 0.0
        %1026 = vmatprep.subr.mxu0 0.0
        %1027 = vmatpush1.msra.mxu0 0.0
        %1028 = vmatprep.subr.mxu0 0.0
        %1029 = vmatpush1.msra.mxu0 0.0
        %1030 = vmatprep.subr.mxu0 0.0
        %1031 = vmatpush1.msra.mxu0 0.0
        %1032 = vmatprep.subr.mxu0 0.0
        %1033 = vmatpush1.msra.mxu0 0.0
        %1034 = vmatprep.mubr.f32.mxu0 0.0
        %1035 = vmatmul.mubr.f32.gmra.mrb[0].mxu0 %v956
        %v1036 = vpop.f32.mrb[0].mxu0
        %v1037 = vadd.f32 0.0, %v1036
        %v1038 = vpop.f32.mrb[0].mxu0
        %1039 = vmatprep.mubr.f32.mxu0 0.0
        %1040 = vmatmul.mubr.f32.gmra.mrb[0].mxu0 %v959
        %v1041 = vpop.f32.mrb[0].mxu0
        %v1042 = vadd.f32 0.0, %v1041
        %v1043 = vpop.f32.mrb[0].mxu0
        %1044 = vmatprep.mubr.f32.mxu0 0.0
        %1045 = vmatmul.mubr.f32.gmra.mrb[0].mxu0 %v962
        %v1046 = vpop.f32.mrb[0].mxu0
        %v1047 = vadd.f32 0.0, %v1046
        %v1048 = vpop.f32.mrb[0].mxu0
        %1049 = vmatprep.mubr.f32.mxu0 0.0
        %1050 = vmatmul.mubr.f32.gmra.mrb[0].mxu0 %v965
        %v1051 = vpop.f32.mrb[0].mxu0
        %v1052 = vadd.f32 0.0, %v1051
        %v1053 = vpop.f32.mrb[0].mxu0
        %1054 = vdwg.mxu0
        %v1055 = vadd.f32 %v941, %v1037
        %v1056 = vadd.f32 %v942, %v1042
        %v1057 = vadd.f32 %v943, %v1047
        %v1058 = vadd.f32 %v944, %v1052
        %s1059 = scalar_lea.vmem %s717, 3
        %v1060 = vld [vmem:[%s1059] ss:$2 sm:$0xff]
        %s1061 = scalar_lea.vmem %s717, 19
        %v1062 = vld [vmem:[%s1061] ss:$2 sm:$0xff]
        %s1063 = scalar_lea.vmem %s717, 35
        %v1064 = vld [vmem:[%s1063] ss:$2 sm:$0xff]
        %s1065 = scalar_lea.vmem %s717, 51
        %v1066 = vld [vmem:[%s1065] ss:$2 sm:$0xff]
        %s1067 = scalar_lea.vmem %s257, 28
        %v1068 = vld [vmem:[%s1067] sm:$0x7]
        %v1070 = vsel %vm285, %v1060, 0
        %v1073 = vsel %vm285, %v1062, 0
        %v1076 = vsel %vm285, %v1064, 0
        %v1079 = vsel %vm285, %v1066, 0
        %v1082 = vsel %vm298, %v1068, 0
        %1084 = vmatprep.subr.mxu0 0.0
        %1085 = vmatpush1.msra.mxu0 %v1082
        %1086 = vmatprep.subr.mxu0 0.0
        %1087 = vmatpush1.msra.mxu0 0.0
        %1088 = vmatprep.subr.mxu0 0.0
        %1089 = vmatpush1.msra.mxu0 0.0
        %1090 = vmatprep.subr.mxu0 0.0
        %1091 = vmatpush1.msra.mxu0 0.0
        %1092 = vmatprep.subr.mxu0 0.0
        %1093 = vmatpush1.msra.mxu0 0.0
        %1094 = vmatprep.subr.mxu0 0.0
        %1095 = vmatpush1.msra.mxu0 0.0
        %1096 = vmatprep.subr.mxu0 0.0
        %1097 = vmatpush1.msra.mxu0 0.0
        %1098 = vmatprep.subr.mxu0 0.0
        %1099 = vmatpush1.msra.mxu0 0.0
        %1100 = vmatprep.subr.mxu0 0.0
        %1101 = vmatpush1.msra.mxu0 0.0
        %1102 = vmatprep.subr.mxu0 0.0
        %1103 = vmatpush1.msra.mxu0 0.0
        %1104 = vmatprep.subr.mxu0 0.0
        %1105 = vmatpush1.msra.mxu0 0.0
        %1106 = vmatprep.subr.mxu0 0.0
        %1107 = vmatpush1.msra.mxu0 0.0
        %1108 = vmatprep.subr.mxu0 0.0
        %1109 = vmatpush1.msra.mxu0 0.0
        %1110 = vmatprep.subr.mxu0 0.0
        %1111 = vmatpush1.msra.mxu0 0.0
        %1112 = vmatprep.subr.mxu0 0.0
        %1113 = vmatpush1.msra.mxu0 0.0
        %1114 = vmatprep.subr.mxu0 0.0
        %1115 = vmatpush1.msra.mxu0 0.0
        %1116 = vmatprep.subr.mxu0 0.0
        %1117 = vmatpush1.msra.mxu0 0.0
        %1118 = vmatprep.subr.mxu0 0.0
        %1119 = vmatpush1.msra.mxu0 0.0
        %1120 = vmatprep.subr.mxu0 0.0
        %1121 = vmatpush1.msra.mxu0 0.0
        %1122 = vmatprep.subr.mxu0 0.0
        %1123 = vmatpush1.msra.mxu0 0.0
        %1124 = vmatprep.subr.mxu0 0.0
        %1125 = vmatpush1.msra.mxu0 0.0
        %1126 = vmatprep.subr.mxu0 0.0
        %1127 = vmatpush1.msra.mxu0 0.0
        %1128 = vmatprep.subr.mxu0 0.0
        %1129 = vmatpush1.msra.mxu0 0.0
        %1130 = vmatprep.subr.mxu0 0.0
        %1131 = vmatpush1.msra.mxu0 0.0
        %1132 = vmatprep.subr.mxu0 0.0
        %1133 = vmatpush1.msra.mxu0 0.0
        %1134 = vmatprep.subr.mxu0 0.0
        %1135 = vmatpush1.msra.mxu0 0.0
        %1136 = vmatprep.subr.mxu0 0.0
        %1137 = vmatpush1.msra.mxu0 0.0
        %1138 = vmatprep.subr.mxu0 0.0
        %1139 = vmatpush1.msra.mxu0 0.0
        %1140 = vmatprep.subr.mxu0 0.0
        %1141 = vmatpush1.msra.mxu0 0.0
        %1142 = vmatprep.subr.mxu0 0.0
        %1143 = vmatpush1.msra.mxu0 0.0
        %1144 = vmatprep.subr.mxu0 0.0
        %1145 = vmatpush1.msra.mxu0 0.0
        %1146 = vmatprep.subr.mxu0 0.0
        %1147 = vmatpush1.msra.mxu0 0.0
        %1148 = vmatprep.mubr.f32.mxu0 0.0
        %1149 = vmatmul.mubr.f32.gmra.mrb[0].mxu0 %v1070
        %v1150 = vpop.f32.mrb[0].mxu0
        %v1151 = vadd.f32 0.0, %v1150
        %v1152 = vpop.f32.mrb[0].mxu0
        %1153 = vmatprep.mubr.f32.mxu0 0.0
        %1154 = vmatmul.mubr.f32.gmra.mrb[0].mxu0 %v1073
        %v1155 = vpop.f32.mrb[0].mxu0
        %v1156 = vadd.f32 0.0, %v1155
        %v1157 = vpop.f32.mrb[0].mxu0
        %1158 = vmatprep.mubr.f32.mxu0 0.0
        %1159 = vmatmul.mubr.f32.gmra.mrb[0].mxu0 %v1076
        %v1160 = vpop.f32.mrb[0].mxu0
        %v1161 = vadd.f32 0.0, %v1160
        %v1162 = vpop.f32.mrb[0].mxu0
        %1163 = vmatprep.mubr.f32.mxu0 0.0
        %1164 = vmatmul.mubr.f32.gmra.mrb[0].mxu0 %v1079
        %v1165 = vpop.f32.mrb[0].mxu0
        %v1166 = vadd.f32 0.0, %v1165
        %v1167 = vpop.f32.mrb[0].mxu0
        %1168 = vdwg.mxu0
        %v1169 = vadd.f32 %v1055, %v1151
        %v1170 = vadd.f32 %v1056, %v1156
        %v1171 = vadd.f32 %v1057, %v1161
        %v1172 = vadd.f32 %v1058, %v1166
        %s1173 = sadd.s32 %s264, 2
        %s1174 = smul.u32 %s1173, 72
        %s1175 = scalar_lea.vmem %s253, %s1174
        %v1176 = vld [vmem:[%s1175] ss:$2 sm:$0xff]
        %s1177 = scalar_lea.vmem %s1175, 16
        %v1178 = vld [vmem:[%s1177] ss:$2 sm:$0xff]
        %s1179 = scalar_lea.vmem %s1175, 32
        %v1180 = vld [vmem:[%s1179] ss:$2 sm:$0xff]
        %s1181 = scalar_lea.vmem %s1175, 48
        %v1182 = vld [vmem:[%s1181] ss:$2 sm:$0xff]
        %s1183 = scalar_lea.vmem %s257, 32
        %v1184 = vld [vmem:[%s1183] sm:$0x7]
        %v1186 = vsel %vm285, %v1176, 0
        %v1189 = vsel %vm285, %v1178, 0
        %v1192 = vsel %vm285, %v1180, 0
        %v1195 = vsel %vm285, %v1182, 0
        %v1198 = vsel %vm298, %v1184, 0
        %1200 = vmatprep.subr.mxu0 0.0
        %1201 = vmatpush1.msra.mxu0 %v1198
        %1202 = vmatprep.subr.mxu0 0.0
        %1203 = vmatpush1.msra.mxu0 0.0
        %1204 = vmatprep.subr.mxu0 0.0
        %1205 = vmatpush1.msra.mxu0 0.0
        %1206 = vmatprep.subr.mxu0 0.0
        %1207 = vmatpush1.msra.mxu0 0.0
        %1208 = vmatprep.subr.mxu0 0.0
        %1209 = vmatpush1.msra.mxu0 0.0
        %1210 = vmatprep.subr.mxu0 0.0
        %1211 = vmatpush1.msra.mxu0 0.0
        %1212 = vmatprep.subr.mxu0 0.0
        %1213 = vmatpush1.msra.mxu0 0.0
        %1214 = vmatprep.subr.mxu0 0.0
        %1215 = vmatpush1.msra.mxu0 0.0
        %1216 = vmatprep.subr.mxu0 0.0
        %1217 = vmatpush1.msra.mxu0 0.0
        %1218 = vmatprep.subr.mxu0 0.0
        %1219 = vmatpush1.msra.mxu0 0.0
        %1220 = vmatprep.subr.mxu0 0.0
        %1221 = vmatpush1.msra.mxu0 0.0
        %1222 = vmatprep.subr.mxu0 0.0
        %1223 = vmatpush1.msra.mxu0 0.0
        %1224 = vmatprep.subr.mxu0 0.0
        %1225 = vmatpush1.msra.mxu0 0.0
        %1226 = vmatprep.subr.mxu0 0.0
        %1227 = vmatpush1.msra.mxu0 0.0
        %1228 = vmatprep.subr.mxu0 0.0
        %1229 = vmatpush1.msra.mxu0 0.0
        %1230 = vmatprep.subr.mxu0 0.0
        %1231 = vmatpush1.msra.mxu0 0.0
        %1232 = vmatprep.subr.mxu0 0.0
        %1233 = vmatpush1.msra.mxu0 0.0
        %1234 = vmatprep.subr.mxu0 0.0
        %1235 = vmatpush1.msra.mxu0 0.0
        %1236 = vmatprep.subr.mxu0 0.0
        %1237 = vmatpush1.msra.mxu0 0.0
        %1238 = vmatprep.subr.mxu0 0.0
        %1239 = vmatpush1.msra.mxu0 0.0
        %1240 = vmatprep.subr.mxu0 0.0
        %1241 = vmatpush1.msra.mxu0 0.0
        %1242 = vmatprep.subr.mxu0 0.0
        %1243 = vmatpush1.msra.mxu0 0.0
        %1244 = vmatprep.subr.mxu0 0.0
        %1245 = vmatpush1.msra.mxu0 0.0
        %1246 = vmatprep.subr.mxu0 0.0
        %1247 = vmatpush1.msra.mxu0 0.0
        %1248 = vmatprep.subr.mxu0 0.0
        %1249 = vmatpush1.msra.mxu0 0.0
        %1250 = vmatprep.subr.mxu0 0.0
        %1251 = vmatpush1.msra.mxu0 0.0
        %1252 = vmatprep.subr.mxu0 0.0
        %1253 = vmatpush1.msra.mxu0 0.0
        %1254 = vmatprep.subr.mxu0 0.0
        %1255 = vmatpush1.msra.mxu0 0.0
        %1256 = vmatprep.subr.mxu0 0.0
        %1257 = vmatpush1.msra.mxu0 0.0
        %1258 = vmatprep.subr.mxu0 0.0
        %1259 = vmatpush1.msra.mxu0 0.0
        %1260 = vmatprep.subr.mxu0 0.0
        %1261 = vmatpush1.msra.mxu0 0.0
        %1262 = vmatprep.subr.mxu0 0.0
        %1263 = vmatpush1.msra.mxu0 0.0
        %1264 = vmatprep.mubr.f32.mxu0 0.0
        %1265 = vmatmul.mubr.f32.gmra.mrb[0].mxu0 %v1186
        %v1266 = vpop.f32.mrb[0].mxu0
        %v1267 = vadd.f32 0.0, %v1266
        %v1268 = vpop.f32.mrb[0].mxu0
        %1269 = vmatprep.mubr.f32.mxu0 0.0
        %1270 = vmatmul.mubr.f32.gmra.mrb[0].mxu0 %v1189
        %v1271 = vpop.f32.mrb[0].mxu0
        %v1272 = vadd.f32 0.0, %v1271
        %v1273 = vpop.f32.mrb[0].mxu0
        %1274 = vmatprep.mubr.f32.mxu0 0.0
        %1275 = vmatmul.mubr.f32.gmra.mrb[0].mxu0 %v1192
        %v1276 = vpop.f32.mrb[0].mxu0
        %v1277 = vadd.f32 0.0, %v1276
        %v1278 = vpop.f32.mrb[0].mxu0
        %1279 = vmatprep.mubr.f32.mxu0 0.0
        %1280 = vmatmul.mubr.f32.gmra.mrb[0].mxu0 %v1195
        %v1281 = vpop.f32.mrb[0].mxu0
        %v1282 = vadd.f32 0.0, %v1281
        %v1283 = vpop.f32.mrb[0].mxu0
        %1284 = vdwg.mxu0
        %v1285 = vadd.f32 %v1169, %v1267
        %v1286 = vadd.f32 %v1170, %v1272
        %v1287 = vadd.f32 %v1171, %v1277
        %v1288 = vadd.f32 %v1172, %v1282
        %s1289 = scalar_lea.vmem %s1175, 1
        %v1290 = vld [vmem:[%s1289] ss:$2 sm:$0xff]
        %s1291 = scalar_lea.vmem %s1175, 17
        %v1292 = vld [vmem:[%s1291] ss:$2 sm:$0xff]
        %s1293 = scalar_lea.vmem %s1175, 33
        %v1294 = vld [vmem:[%s1293] ss:$2 sm:$0xff]
        %s1295 = scalar_lea.vmem %s1175, 49
        %v1296 = vld [vmem:[%s1295] ss:$2 sm:$0xff]
        %s1297 = scalar_lea.vmem %s257, 36
        %v1298 = vld [vmem:[%s1297] sm:$0x7]
        %v1300 = vsel %vm285, %v1290, 0
        %v1303 = vsel %vm285, %v1292, 0
        %v1306 = vsel %vm285, %v1294, 0
        %v1309 = vsel %vm285, %v1296, 0
        %v1312 = vsel %vm298, %v1298, 0
        %1314 = vmatprep.subr.mxu0 0.0
        %1315 = vmatpush1.msra.mxu0 %v1312
        %1316 = vmatprep.subr.mxu0 0.0
        %1317 = vmatpush1.msra.mxu0 0.0
        %1318 = vmatprep.subr.mxu0 0.0
        %1319 = vmatpush1.msra.mxu0 0.0
        %1320 = vmatprep.subr.mxu0 0.0
        %1321 = vmatpush1.msra.mxu0 0.0
        %1322 = vmatprep.subr.mxu0 0.0
        %1323 = vmatpush1.msra.mxu0 0.0
        %1324 = vmatprep.subr.mxu0 0.0
        %1325 = vmatpush1.msra.mxu0 0.0
        %1326 = vmatprep.subr.mxu0 0.0
        %1327 = vmatpush1.msra.mxu0 0.0
        %1328 = vmatprep.subr.mxu0 0.0
        %1329 = vmatpush1.msra.mxu0 0.0
        %1330 = vmatprep.subr.mxu0 0.0
        %1331 = vmatpush1.msra.mxu0 0.0
        %1332 = vmatprep.subr.mxu0 0.0
        %1333 = vmatpush1.msra.mxu0 0.0
        %1334 = vmatprep.subr.mxu0 0.0
        %1335 = vmatpush1.msra.mxu0 0.0
        %1336 = vmatprep.subr.mxu0 0.0
        %1337 = vmatpush1.msra.mxu0 0.0
        %1338 = vmatprep.subr.mxu0 0.0
        %1339 = vmatpush1.msra.mxu0 0.0
        %1340 = vmatprep.subr.mxu0 0.0
        %1341 = vmatpush1.msra.mxu0 0.0
        %1342 = vmatprep.subr.mxu0 0.0
        %1343 = vmatpush1.msra.mxu0 0.0
        %1344 = vmatprep.subr.mxu0 0.0
        %1345 = vmatpush1.msra.mxu0 0.0
        %1346 = vmatprep.subr.mxu0 0.0
        %1347 = vmatpush1.msra.mxu0 0.0
        %1348 = vmatprep.subr.mxu0 0.0
        %1349 = vmatpush1.msra.mxu0 0.0
        %1350 = vmatprep.subr.mxu0 0.0
        %1351 = vmatpush1.msra.mxu0 0.0
        %1352 = vmatprep.subr.mxu0 0.0
        %1353 = vmatpush1.msra.mxu0 0.0
        %1354 = vmatprep.subr.mxu0 0.0
        %1355 = vmatpush1.msra.mxu0 0.0
        %1356 = vmatprep.subr.mxu0 0.0
        %1357 = vmatpush1.msra.mxu0 0.0
        %1358 = vmatprep.subr.mxu0 0.0
        %1359 = vmatpush1.msra.mxu0 0.0
        %1360 = vmatprep.subr.mxu0 0.0
        %1361 = vmatpush1.msra.mxu0 0.0
        %1362 = vmatprep.subr.mxu0 0.0
        %1363 = vmatpush1.msra.mxu0 0.0
        %1364 = vmatprep.subr.mxu0 0.0
        %1365 = vmatpush1.msra.mxu0 0.0
        %1366 = vmatprep.subr.mxu0 0.0
        %1367 = vmatpush1.msra.mxu0 0.0
        %1368 = vmatprep.subr.mxu0 0.0
        %1369 = vmatpush1.msra.mxu0 0.0
        %1370 = vmatprep.subr.mxu0 0.0
        %1371 = vmatpush1.msra.mxu0 0.0
        %1372 = vmatprep.subr.mxu0 0.0
        %1373 = vmatpush1.msra.mxu0 0.0
        %1374 = vmatprep.subr.mxu0 0.0
        %1375 = vmatpush1.msra.mxu0 0.0
        %1376 = vmatprep.subr.mxu0 0.0
        %1377 = vmatpush1.msra.mxu0 0.0
        %1378 = vmatprep.mubr.f32.mxu0 0.0
        %1379 = vmatmul.mubr.f32.gmra.mrb[0].mxu0 %v1300
        %v1380 = vpop.f32.mrb[0].mxu0
        %v1381 = vadd.f32 0.0, %v1380
        %v1382 = vpop.f32.mrb[0].mxu0
        %1383 = vmatprep.mubr.f32.mxu0 0.0
        %1384 = vmatmul.mubr.f32.gmra.mrb[0].mxu0 %v1303
        %v1385 = vpop.f32.mrb[0].mxu0
        %v1386 = vadd.f32 0.0, %v1385
        %v1387 = vpop.f32.mrb[0].mxu0
        %1388 = vmatprep.mubr.f32.mxu0 0.0
        %1389 = vmatmul.mubr.f32.gmra.mrb[0].mxu0 %v1306
        %v1390 = vpop.f32.mrb[0].mxu0
        %v1391 = vadd.f32 0.0, %v1390
        %v1392 = vpop.f32.mrb[0].mxu0
        %1393 = vmatprep.mubr.f32.mxu0 0.0
        %1394 = vmatmul.mubr.f32.gmra.mrb[0].mxu0 %v1309
        %v1395 = vpop.f32.mrb[0].mxu0
        %v1396 = vadd.f32 0.0, %v1395
        %v1397 = vpop.f32.mrb[0].mxu0
        %1398 = vdwg.mxu0
        %v1399 = vadd.f32 %v1285, %v1381
        %v1400 = vadd.f32 %v1286, %v1386
        %v1401 = vadd.f32 %v1287, %v1391
        %v1402 = vadd.f32 %v1288, %v1396
        %s1403 = scalar_lea.vmem %s1175, 2
        %v1404 = vld [vmem:[%s1403] ss:$2 sm:$0xff]
        %s1405 = scalar_lea.vmem %s1175, 18
        %v1406 = vld [vmem:[%s1405] ss:$2 sm:$0xff]
        %s1407 = scalar_lea.vmem %s1175, 34
        %v1408 = vld [vmem:[%s1407] ss:$2 sm:$0xff]
        %s1409 = scalar_lea.vmem %s1175, 50
        %v1410 = vld [vmem:[%s1409] ss:$2 sm:$0xff]
        %s1411 = scalar_lea.vmem %s257, 40
        %v1412 = vld [vmem:[%s1411] sm:$0x7]
        %v1414 = vsel %vm285, %v1404, 0
        %v1417 = vsel %vm285, %v1406, 0
        %v1420 = vsel %vm285, %v1408, 0
        %v1423 = vsel %vm285, %v1410, 0
        %v1426 = vsel %vm298, %v1412, 0
        %1428 = vmatprep.subr.mxu0 0.0
        %1429 = vmatpush1.msra.mxu0 %v1426
        %1430 = vmatprep.subr.mxu0 0.0
        %1431 = vmatpush1.msra.mxu0 0.0
        %1432 = vmatprep.subr.mxu0 0.0
        %1433 = vmatpush1.msra.mxu0 0.0
        %1434 = vmatprep.subr.mxu0 0.0
        %1435 = vmatpush1.msra.mxu0 0.0
        %1436 = vmatprep.subr.mxu0 0.0
        %1437 = vmatpush1.msra.mxu0 0.0
        %1438 = vmatprep.subr.mxu0 0.0
        %1439 = vmatpush1.msra.mxu0 0.0
        %1440 = vmatprep.subr.mxu0 0.0
        %1441 = vmatpush1.msra.mxu0 0.0
        %1442 = vmatprep.subr.mxu0 0.0
        %1443 = vmatpush1.msra.mxu0 0.0
        %1444 = vmatprep.subr.mxu0 0.0
        %1445 = vmatpush1.msra.mxu0 0.0
        %1446 = vmatprep.subr.mxu0 0.0
        %1447 = vmatpush1.msra.mxu0 0.0
        %1448 = vmatprep.subr.mxu0 0.0
        %1449 = vmatpush1.msra.mxu0 0.0
        %1450 = vmatprep.subr.mxu0 0.0
        %1451 = vmatpush1.msra.mxu0 0.0
        %1452 = vmatprep.subr.mxu0 0.0
        %1453 = vmatpush1.msra.mxu0 0.0
        %1454 = vmatprep.subr.mxu0 0.0
        %1455 = vmatpush1.msra.mxu0 0.0
        %1456 = vmatprep.subr.mxu0 0.0
        %1457 = vmatpush1.msra.mxu0 0.0
        %1458 = vmatprep.subr.mxu0 0.0
        %1459 = vmatpush1.msra.mxu0 0.0
        %1460 = vmatprep.subr.mxu0 0.0
        %1461 = vmatpush1.msra.mxu0 0.0
        %1462 = vmatprep.subr.mxu0 0.0
        %1463 = vmatpush1.msra.mxu0 0.0
        %1464 = vmatprep.subr.mxu0 0.0
        %1465 = vmatpush1.msra.mxu0 0.0
        %1466 = vmatprep.subr.mxu0 0.0
        %1467 = vmatpush1.msra.mxu0 0.0
        %1468 = vmatprep.subr.mxu0 0.0
        %1469 = vmatpush1.msra.mxu0 0.0
        %1470 = vmatprep.subr.mxu0 0.0
        %1471 = vmatpush1.msra.mxu0 0.0
        %1472 = vmatprep.subr.mxu0 0.0
        %1473 = vmatpush1.msra.mxu0 0.0
        %1474 = vmatprep.subr.mxu0 0.0
        %1475 = vmatpush1.msra.mxu0 0.0
        %1476 = vmatprep.subr.mxu0 0.0
        %1477 = vmatpush1.msra.mxu0 0.0
        %1478 = vmatprep.subr.mxu0 0.0
        %1479 = vmatpush1.msra.mxu0 0.0
        %1480 = vmatprep.subr.mxu0 0.0
        %1481 = vmatpush1.msra.mxu0 0.0
        %1482 = vmatprep.subr.mxu0 0.0
        %1483 = vmatpush1.msra.mxu0 0.0
        %1484 = vmatprep.subr.mxu0 0.0
        %1485 = vmatpush1.msra.mxu0 0.0
        %1486 = vmatprep.subr.mxu0 0.0
        %1487 = vmatpush1.msra.mxu0 0.0
        %1488 = vmatprep.subr.mxu0 0.0
        %1489 = vmatpush1.msra.mxu0 0.0
        %1490 = vmatprep.subr.mxu0 0.0
        %1491 = vmatpush1.msra.mxu0 0.0
        %1492 = vmatprep.mubr.f32.mxu0 0.0
        %1493 = vmatmul.mubr.f32.gmra.mrb[0].mxu0 %v1414
        %v1494 = vpop.f32.mrb[0].mxu0
        %v1495 = vadd.f32 0.0, %v1494
        %v1496 = vpop.f32.mrb[0].mxu0
        %1497 = vmatprep.mubr.f32.mxu0 0.0
        %1498 = vmatmul.mubr.f32.gmra.mrb[0].mxu0 %v1417
        %v1499 = vpop.f32.mrb[0].mxu0
        %v1500 = vadd.f32 0.0, %v1499
        %v1501 = vpop.f32.mrb[0].mxu0
        %1502 = vmatprep.mubr.f32.mxu0 0.0
        %1503 = vmatmul.mubr.f32.gmra.mrb[0].mxu0 %v1420
        %v1504 = vpop.f32.mrb[0].mxu0
        %v1505 = vadd.f32 0.0, %v1504
        %v1506 = vpop.f32.mrb[0].mxu0
        %1507 = vmatprep.mubr.f32.mxu0 0.0
        %1508 = vmatmul.mubr.f32.gmra.mrb[0].mxu0 %v1423
        %v1509 = vpop.f32.mrb[0].mxu0
        %v1510 = vadd.f32 0.0, %v1509
        %v1511 = vpop.f32.mrb[0].mxu0
        %1512 = vdwg.mxu0
        %v1513 = vadd.f32 %v1399, %v1495
        %v1514 = vadd.f32 %v1400, %v1500
        %v1515 = vadd.f32 %v1401, %v1505
        %v1516 = vadd.f32 %v1402, %v1510
        %s1517 = scalar_lea.vmem %s1175, 3
        %v1518 = vld [vmem:[%s1517] ss:$2 sm:$0xff]
        %s1519 = scalar_lea.vmem %s1175, 19
        %v1520 = vld [vmem:[%s1519] ss:$2 sm:$0xff]
        %s1521 = scalar_lea.vmem %s1175, 35
        %v1522 = vld [vmem:[%s1521] ss:$2 sm:$0xff]
        %s1523 = scalar_lea.vmem %s1175, 51
        %v1524 = vld [vmem:[%s1523] ss:$2 sm:$0xff]
        %s1525 = scalar_lea.vmem %s257, 44
        %v1526 = vld [vmem:[%s1525] sm:$0x7]
        %v1528 = vsel %vm285, %v1518, 0
        %v1531 = vsel %vm285, %v1520, 0
        %v1534 = vsel %vm285, %v1522, 0
        %v1537 = vsel %vm285, %v1524, 0
        %v1540 = vsel %vm298, %v1526, 0
        %1542 = vmatprep.subr.mxu0 0.0
        %1543 = vmatpush1.msra.mxu0 %v1540
        %1544 = vmatprep.subr.mxu0 0.0
        %1545 = vmatpush1.msra.mxu0 0.0
        %1546 = vmatprep.subr.mxu0 0.0
        %1547 = vmatpush1.msra.mxu0 0.0
        %1548 = vmatprep.subr.mxu0 0.0
        %1549 = vmatpush1.msra.mxu0 0.0
        %1550 = vmatprep.subr.mxu0 0.0
        %1551 = vmatpush1.msra.mxu0 0.0
        %1552 = vmatprep.subr.mxu0 0.0
        %1553 = vmatpush1.msra.mxu0 0.0
        %1554 = vmatprep.subr.mxu0 0.0
        %1555 = vmatpush1.msra.mxu0 0.0
        %1556 = vmatprep.subr.mxu0 0.0
        %1557 = vmatpush1.msra.mxu0 0.0
        %1558 = vmatprep.subr.mxu0 0.0
        %1559 = vmatpush1.msra.mxu0 0.0
        %1560 = vmatprep.subr.mxu0 0.0
        %1561 = vmatpush1.msra.mxu0 0.0
        %1562 = vmatprep.subr.mxu0 0.0
        %1563 = vmatpush1.msra.mxu0 0.0
        %1564 = vmatprep.subr.mxu0 0.0
        %1565 = vmatpush1.msra.mxu0 0.0
        %1566 = vmatprep.subr.mxu0 0.0
        %1567 = vmatpush1.msra.mxu0 0.0
        %1568 = vmatprep.subr.mxu0 0.0
        %1569 = vmatpush1.msra.mxu0 0.0
        %1570 = vmatprep.subr.mxu0 0.0
        %1571 = vmatpush1.msra.mxu0 0.0
        %1572 = vmatprep.subr.mxu0 0.0
        %1573 = vmatpush1.msra.mxu0 0.0
        %1574 = vmatprep.subr.mxu0 0.0
        %1575 = vmatpush1.msra.mxu0 0.0
        %1576 = vmatprep.subr.mxu0 0.0
        %1577 = vmatpush1.msra.mxu0 0.0
        %1578 = vmatprep.subr.mxu0 0.0
        %1579 = vmatpush1.msra.mxu0 0.0
        %1580 = vmatprep.subr.mxu0 0.0
        %1581 = vmatpush1.msra.mxu0 0.0
        %1582 = vmatprep.subr.mxu0 0.0
        %1583 = vmatpush1.msra.mxu0 0.0
        %1584 = vmatprep.subr.mxu0 0.0
        %1585 = vmatpush1.msra.mxu0 0.0
        %1586 = vmatprep.subr.mxu0 0.0
        %1587 = vmatpush1.msra.mxu0 0.0
        %1588 = vmatprep.subr.mxu0 0.0
        %1589 = vmatpush1.msra.mxu0 0.0
        %1590 = vmatprep.subr.mxu0 0.0
        %1591 = vmatpush1.msra.mxu0 0.0
        %1592 = vmatprep.subr.mxu0 0.0
        %1593 = vmatpush1.msra.mxu0 0.0
        %1594 = vmatprep.subr.mxu0 0.0
        %1595 = vmatpush1.msra.mxu0 0.0
        %1596 = vmatprep.subr.mxu0 0.0
        %1597 = vmatpush1.msra.mxu0 0.0
        %1598 = vmatprep.subr.mxu0 0.0
        %1599 = vmatpush1.msra.mxu0 0.0
        %1600 = vmatprep.subr.mxu0 0.0
        %1601 = vmatpush1.msra.mxu0 0.0
        %1602 = vmatprep.subr.mxu0 0.0
        %1603 = vmatpush1.msra.mxu0 0.0
        %1604 = vmatprep.subr.mxu0 0.0
        %1605 = vmatpush1.msra.mxu0 0.0
        %1606 = vmatprep.mubr.f32.mxu0 0.0
        %1607 = vmatmul.mubr.f32.gmra.mrb[0].mxu0 %v1528
        %v1608 = vpop.f32.mrb[0].mxu0
        %v1609 = vadd.f32 0.0, %v1608
        %v1610 = vpop.f32.mrb[0].mxu0
        %1611 = vmatprep.mubr.f32.mxu0 0.0
        %1612 = vmatmul.mubr.f32.gmra.mrb[0].mxu0 %v1531
        %v1613 = vpop.f32.mrb[0].mxu0
        %v1614 = vadd.f32 0.0, %v1613
        %v1615 = vpop.f32.mrb[0].mxu0
        %1616 = vmatprep.mubr.f32.mxu0 0.0
        %1617 = vmatmul.mubr.f32.gmra.mrb[0].mxu0 %v1534
        %v1618 = vpop.f32.mrb[0].mxu0
        %v1619 = vadd.f32 0.0, %v1618
        %v1620 = vpop.f32.mrb[0].mxu0
        %1621 = vmatprep.mubr.f32.mxu0 0.0
        %1622 = vmatmul.mubr.f32.gmra.mrb[0].mxu0 %v1537
        %v1623 = vpop.f32.mrb[0].mxu0
        %v1624 = vadd.f32 0.0, %v1623
        %v1625 = vpop.f32.mrb[0].mxu0
        %1626 = vdwg.mxu0
        %v1627 = vadd.f32 %v1513, %v1609
        %v1628 = vadd.f32 %v1514, %v1614
        %v1629 = vadd.f32 %v1515, %v1619
        %v1630 = vadd.f32 %v1516, %v1624
        %s1631 = sadd.s32 %s264, 3
        %s1632 = smul.u32 %s1631, 72
        %s1633 = scalar_lea.vmem %s253, %s1632
        %v1634 = vld [vmem:[%s1633] ss:$2 sm:$0xff]
        %s1635 = scalar_lea.vmem %s1633, 16
        %v1636 = vld [vmem:[%s1635] ss:$2 sm:$0xff]
        %s1637 = scalar_lea.vmem %s1633, 32
        %v1638 = vld [vmem:[%s1637] ss:$2 sm:$0xff]
        %s1639 = scalar_lea.vmem %s1633, 48
        %v1640 = vld [vmem:[%s1639] ss:$2 sm:$0xff]
        %s1641 = scalar_lea.vmem %s257, 48
        %v1642 = vld [vmem:[%s1641] sm:$0x7]
        %v1644 = vsel %vm285, %v1634, 0
        %v1647 = vsel %vm285, %v1636, 0
        %v1650 = vsel %vm285, %v1638, 0
        %v1653 = vsel %vm285, %v1640, 0
        %v1656 = vsel %vm298, %v1642, 0
        %1658 = vmatprep.subr.mxu0 0.0
        %1659 = vmatpush1.msra.mxu0 %v1656
        %1660 = vmatprep.subr.mxu0 0.0
        %1661 = vmatpush1.msra.mxu0 0.0
        %1662 = vmatprep.subr.mxu0 0.0
        %1663 = vmatpush1.msra.mxu0 0.0
        %1664 = vmatprep.subr.mxu0 0.0
        %1665 = vmatpush1.msra.mxu0 0.0
        %1666 = vmatprep.subr.mxu0 0.0
        %1667 = vmatpush1.msra.mxu0 0.0
        %1668 = vmatprep.subr.mxu0 0.0
        %1669 = vmatpush1.msra.mxu0 0.0
        %1670 = vmatprep.subr.mxu0 0.0
        %1671 = vmatpush1.msra.mxu0 0.0
        %1672 = vmatprep.subr.mxu0 0.0
        %1673 = vmatpush1.msra.mxu0 0.0
        %1674 = vmatprep.subr.mxu0 0.0
        %1675 = vmatpush1.msra.mxu0 0.0
        %1676 = vmatprep.subr.mxu0 0.0
        %1677 = vmatpush1.msra.mxu0 0.0
        %1678 = vmatprep.subr.mxu0 0.0
        %1679 = vmatpush1.msra.mxu0 0.0
        %1680 = vmatprep.subr.mxu0 0.0
        %1681 = vmatpush1.msra.mxu0 0.0
        %1682 = vmatprep.subr.mxu0 0.0
        %1683 = vmatpush1.msra.mxu0 0.0
        %1684 = vmatprep.subr.mxu0 0.0
        %1685 = vmatpush1.msra.mxu0 0.0
        %1686 = vmatprep.subr.mxu0 0.0
        %1687 = vmatpush1.msra.mxu0 0.0
        %1688 = vmatprep.subr.mxu0 0.0
        %1689 = vmatpush1.msra.mxu0 0.0
        %1690 = vmatprep.subr.mxu0 0.0
        %1691 = vmatpush1.msra.mxu0 0.0
        %1692 = vmatprep.subr.mxu0 0.0
        %1693 = vmatpush1.msra.mxu0 0.0
        %1694 = vmatprep.subr.mxu0 0.0
        %1695 = vmatpush1.msra.mxu0 0.0
        %1696 = vmatprep.subr.mxu0 0.0
        %1697 = vmatpush1.msra.mxu0 0.0
        %1698 = vmatprep.subr.mxu0 0.0
        %1699 = vmatpush1.msra.mxu0 0.0
        %1700 = vmatprep.subr.mxu0 0.0
        %1701 = vmatpush1.msra.mxu0 0.0
        %1702 = vmatprep.subr.mxu0 0.0
        %1703 = vmatpush1.msra.mxu0 0.0
        %1704 = vmatprep.subr.mxu0 0.0
        %1705 = vmatpush1.msra.mxu0 0.0
        %1706 = vmatprep.subr.mxu0 0.0
        %1707 = vmatpush1.msra.mxu0 0.0
        %1708 = vmatprep.subr.mxu0 0.0
        %1709 = vmatpush1.msra.mxu0 0.0
        %1710 = vmatprep.subr.mxu0 0.0
        %1711 = vmatpush1.msra.mxu0 0.0
        %1712 = vmatprep.subr.mxu0 0.0
        %1713 = vmatpush1.msra.mxu0 0.0
        %1714 = vmatprep.subr.mxu0 0.0
        %1715 = vmatpush1.msra.mxu0 0.0
        %1716 = vmatprep.subr.mxu0 0.0
        %1717 = vmatpush1.msra.mxu0 0.0
        %1718 = vmatprep.subr.mxu0 0.0
        %1719 = vmatpush1.msra.mxu0 0.0
        %1720 = vmatprep.subr.mxu0 0.0
        %1721 = vmatpush1.msra.mxu0 0.0
        %1722 = vmatprep.mubr.f32.mxu0 0.0
        %1723 = vmatmul.mubr.f32.gmra.mrb[0].mxu0 %v1644
        %v1724 = vpop.f32.mrb[0].mxu0
        %v1725 = vadd.f32 0.0, %v1724
        %v1726 = vpop.f32.mrb[0].mxu0
        %1727 = vmatprep.mubr.f32.mxu0 0.0
        %1728 = vmatmul.mubr.f32.gmra.mrb[0].mxu0 %v1647
        %v1729 = vpop.f32.mrb[0].mxu0
        %v1730 = vadd.f32 0.0, %v1729
        %v1731 = vpop.f32.mrb[0].mxu0
        %1732 = vmatprep.mubr.f32.mxu0 0.0
        %1733 = vmatmul.mubr.f32.gmra.mrb[0].mxu0 %v1650
        %v1734 = vpop.f32.mrb[0].mxu0
        %v1735 = vadd.f32 0.0, %v1734
        %v1736 = vpop.f32.mrb[0].mxu0
        %1737 = vmatprep.mubr.f32.mxu0 0.0
        %1738 = vmatmul.mubr.f32.gmra.mrb[0].mxu0 %v1653
        %v1739 = vpop.f32.mrb[0].mxu0
        %v1740 = vadd.f32 0.0, %v1739
        %v1741 = vpop.f32.mrb[0].mxu0
        %1742 = vdwg.mxu0
        %v1743 = vadd.f32 %v1627, %v1725
        %v1744 = vadd.f32 %v1628, %v1730
        %v1745 = vadd.f32 %v1629, %v1735
        %v1746 = vadd.f32 %v1630, %v1740
        %s1747 = scalar_lea.vmem %s1633, 1
        %v1748 = vld [vmem:[%s1747] ss:$2 sm:$0xff]
        %s1749 = scalar_lea.vmem %s1633, 17
        %v1750 = vld [vmem:[%s1749] ss:$2 sm:$0xff]
        %s1751 = scalar_lea.vmem %s1633, 33
        %v1752 = vld [vmem:[%s1751] ss:$2 sm:$0xff]
        %s1753 = scalar_lea.vmem %s1633, 49
        %v1754 = vld [vmem:[%s1753] ss:$2 sm:$0xff]
        %s1755 = scalar_lea.vmem %s257, 52
        %v1756 = vld [vmem:[%s1755] sm:$0x7]
        %v1758 = vsel %vm285, %v1748, 0
        %v1761 = vsel %vm285, %v1750, 0
        %v1764 = vsel %vm285, %v1752, 0
        %v1767 = vsel %vm285, %v1754, 0
        %v1770 = vsel %vm298, %v1756, 0
        %1772 = vmatprep.subr.mxu0 0.0
        %1773 = vmatpush1.msra.mxu0 %v1770
        %1774 = vmatprep.subr.mxu0 0.0
        %1775 = vmatpush1.msra.mxu0 0.0
        %1776 = vmatprep.subr.mxu0 0.0
        %1777 = vmatpush1.msra.mxu0 0.0
        %1778 = vmatprep.subr.mxu0 0.0
        %1779 = vmatpush1.msra.mxu0 0.0
        %1780 = vmatprep.subr.mxu0 0.0
        %1781 = vmatpush1.msra.mxu0 0.0
        %1782 = vmatprep.subr.mxu0 0.0
        %1783 = vmatpush1.msra.mxu0 0.0
        %1784 = vmatprep.subr.mxu0 0.0
        %1785 = vmatpush1.msra.mxu0 0.0
        %1786 = vmatprep.subr.mxu0 0.0
        %1787 = vmatpush1.msra.mxu0 0.0
        %1788 = vmatprep.subr.mxu0 0.0
        %1789 = vmatpush1.msra.mxu0 0.0
        %1790 = vmatprep.subr.mxu0 0.0
        %1791 = vmatpush1.msra.mxu0 0.0
        %1792 = vmatprep.subr.mxu0 0.0
        %1793 = vmatpush1.msra.mxu0 0.0
        %1794 = vmatprep.subr.mxu0 0.0
        %1795 = vmatpush1.msra.mxu0 0.0
        %1796 = vmatprep.subr.mxu0 0.0
        %1797 = vmatpush1.msra.mxu0 0.0
        %1798 = vmatprep.subr.mxu0 0.0
        %1799 = vmatpush1.msra.mxu0 0.0
        %1800 = vmatprep.subr.mxu0 0.0
        %1801 = vmatpush1.msra.mxu0 0.0
        %1802 = vmatprep.subr.mxu0 0.0
        %1803 = vmatpush1.msra.mxu0 0.0
        %1804 = vmatprep.subr.mxu0 0.0
        %1805 = vmatpush1.msra.mxu0 0.0
        %1806 = vmatprep.subr.mxu0 0.0
        %1807 = vmatpush1.msra.mxu0 0.0
        %1808 = vmatprep.subr.mxu0 0.0
        %1809 = vmatpush1.msra.mxu0 0.0
        %1810 = vmatprep.subr.mxu0 0.0
        %1811 = vmatpush1.msra.mxu0 0.0
        %1812 = vmatprep.subr.mxu0 0.0
        %1813 = vmatpush1.msra.mxu0 0.0
        %1814 = vmatprep.subr.mxu0 0.0
        %1815 = vmatpush1.msra.mxu0 0.0
        %1816 = vmatprep.subr.mxu0 0.0
        %1817 = vmatpush1.msra.mxu0 0.0
        %1818 = vmatprep.subr.mxu0 0.0
        %1819 = vmatpush1.msra.mxu0 0.0
        %1820 = vmatprep.subr.mxu0 0.0
        %1821 = vmatpush1.msra.mxu0 0.0
        %1822 = vmatprep.subr.mxu0 0.0
        %1823 = vmatpush1.msra.mxu0 0.0
        %1824 = vmatprep.subr.mxu0 0.0
        %1825 = vmatpush1.msra.mxu0 0.0
        %1826 = vmatprep.subr.mxu0 0.0
        %1827 = vmatpush1.msra.mxu0 0.0
        %1828 = vmatprep.subr.mxu0 0.0
        %1829 = vmatpush1.msra.mxu0 0.0
        %1830 = vmatprep.subr.mxu0 0.0
        %1831 = vmatpush1.msra.mxu0 0.0
        %1832 = vmatprep.subr.mxu0 0.0
        %1833 = vmatpush1.msra.mxu0 0.0
        %1834 = vmatprep.subr.mxu0 0.0
        %1835 = vmatpush1.msra.mxu0 0.0
        %1836 = vmatprep.mubr.f32.mxu0 0.0
        %1837 = vmatmul.mubr.f32.gmra.mrb[0].mxu0 %v1758
        %v1838 = vpop.f32.mrb[0].mxu0
        %v1839 = vadd.f32 0.0, %v1838
        %v1840 = vpop.f32.mrb[0].mxu0
        %1841 = vmatprep.mubr.f32.mxu0 0.0
        %1842 = vmatmul.mubr.f32.gmra.mrb[0].mxu0 %v1761
        %v1843 = vpop.f32.mrb[0].mxu0
        %v1844 = vadd.f32 0.0, %v1843
        %v1845 = vpop.f32.mrb[0].mxu0
        %1846 = vmatprep.mubr.f32.mxu0 0.0
        %1847 = vmatmul.mubr.f32.gmra.mrb[0].mxu0 %v1764
        %v1848 = vpop.f32.mrb[0].mxu0
        %v1849 = vadd.f32 0.0, %v1848
        %v1850 = vpop.f32.mrb[0].mxu0
        %1851 = vmatprep.mubr.f32.mxu0 0.0
        %1852 = vmatmul.mubr.f32.gmra.mrb[0].mxu0 %v1767
        %v1853 = vpop.f32.mrb[0].mxu0
        %v1854 = vadd.f32 0.0, %v1853
        %v1855 = vpop.f32.mrb[0].mxu0
        %1856 = vdwg.mxu0
        %v1857 = vadd.f32 %v1743, %v1839
        %v1858 = vadd.f32 %v1744, %v1844
        %v1859 = vadd.f32 %v1745, %v1849
        %v1860 = vadd.f32 %v1746, %v1854
        %s1861 = scalar_lea.vmem %s1633, 2
        %v1862 = vld [vmem:[%s1861] ss:$2 sm:$0xff]
        %s1863 = scalar_lea.vmem %s1633, 18
        %v1864 = vld [vmem:[%s1863] ss:$2 sm:$0xff]
        %s1865 = scalar_lea.vmem %s1633, 34
        %v1866 = vld [vmem:[%s1865] ss:$2 sm:$0xff]
        %s1867 = scalar_lea.vmem %s1633, 50
        %v1868 = vld [vmem:[%s1867] ss:$2 sm:$0xff]
        %s1869 = scalar_lea.vmem %s257, 56
        %v1870 = vld [vmem:[%s1869] sm:$0x7]
        %v1872 = vsel %vm285, %v1862, 0
        %v1875 = vsel %vm285, %v1864, 0
        %v1878 = vsel %vm285, %v1866, 0
        %v1881 = vsel %vm285, %v1868, 0
        %v1884 = vsel %vm298, %v1870, 0
        %1886 = vmatprep.subr.mxu0 0.0
        %1887 = vmatpush1.msra.mxu0 %v1884
        %1888 = vmatprep.subr.mxu0 0.0
        %1889 = vmatpush1.msra.mxu0 0.0
        %1890 = vmatprep.subr.mxu0 0.0
        %1891 = vmatpush1.msra.mxu0 0.0
        %1892 = vmatprep.subr.mxu0 0.0
        %1893 = vmatpush1.msra.mxu0 0.0
        %1894 = vmatprep.subr.mxu0 0.0
        %1895 = vmatpush1.msra.mxu0 0.0
        %1896 = vmatprep.subr.mxu0 0.0
        %1897 = vmatpush1.msra.mxu0 0.0
        %1898 = vmatprep.subr.mxu0 0.0
        %1899 = vmatpush1.msra.mxu0 0.0
        %1900 = vmatprep.subr.mxu0 0.0
        %1901 = vmatpush1.msra.mxu0 0.0
        %1902 = vmatprep.subr.mxu0 0.0
        %1903 = vmatpush1.msra.mxu0 0.0
        %1904 = vmatprep.subr.mxu0 0.0
        %1905 = vmatpush1.msra.mxu0 0.0
        %1906 = vmatprep.subr.mxu0 0.0
        %1907 = vmatpush1.msra.mxu0 0.0
        %1908 = vmatprep.subr.mxu0 0.0
        %1909 = vmatpush1.msra.mxu0 0.0
        %1910 = vmatprep.subr.mxu0 0.0
        %1911 = vmatpush1.msra.mxu0 0.0
        %1912 = vmatprep.subr.mxu0 0.0
        %1913 = vmatpush1.msra.mxu0 0.0
        %1914 = vmatprep.subr.mxu0 0.0
        %1915 = vmatpush1.msra.mxu0 0.0
        %1916 = vmatprep.subr.mxu0 0.0
        %1917 = vmatpush1.msra.mxu0 0.0
        %1918 = vmatprep.subr.mxu0 0.0
        %1919 = vmatpush1.msra.mxu0 0.0
        %1920 = vmatprep.subr.mxu0 0.0
        %1921 = vmatpush1.msra.mxu0 0.0
        %1922 = vmatprep.subr.mxu0 0.0
        %1923 = vmatpush1.msra.mxu0 0.0
        %1924 = vmatprep.subr.mxu0 0.0
        %1925 = vmatpush1.msra.mxu0 0.0
        %1926 = vmatprep.subr.mxu0 0.0
        %1927 = vmatpush1.msra.mxu0 0.0
        %1928 = vmatprep.subr.mxu0 0.0
        %1929 = vmatpush1.msra.mxu0 0.0
        %1930 = vmatprep.subr.mxu0 0.0
        %1931 = vmatpush1.msra.mxu0 0.0
        %1932 = vmatprep.subr.mxu0 0.0
        %1933 = vmatpush1.msra.mxu0 0.0
        %1934 = vmatprep.subr.mxu0 0.0
        %1935 = vmatpush1.msra.mxu0 0.0
        %1936 = vmatprep.subr.mxu0 0.0
        %1937 = vmatpush1.msra.mxu0 0.0
        %1938 = vmatprep.subr.mxu0 0.0
        %1939 = vmatpush1.msra.mxu0 0.0
        %1940 = vmatprep.subr.mxu0 0.0
        %1941 = vmatpush1.msra.mxu0 0.0
        %1942 = vmatprep.subr.mxu0 0.0
        %1943 = vmatpush1.msra.mxu0 0.0
        %1944 = vmatprep.subr.mxu0 0.0
        %1945 = vmatpush1.msra.mxu0 0.0
        %1946 = vmatprep.subr.mxu0 0.0
        %1947 = vmatpush1.msra.mxu0 0.0
        %1948 = vmatprep.subr.mxu0 0.0
        %1949 = vmatpush1.msra.mxu0 0.0
        %1950 = vmatprep.mubr.f32.mxu0 0.0
        %1951 = vmatmul.mubr.f32.gmra.mrb[0].mxu0 %v1872
        %v1952 = vpop.f32.mrb[0].mxu0
        %v1953 = vadd.f32 0.0, %v1952
        %v1954 = vpop.f32.mrb[0].mxu0
        %1955 = vmatprep.mubr.f32.mxu0 0.0
        %1956 = vmatmul.mubr.f32.gmra.mrb[0].mxu0 %v1875
        %v1957 = vpop.f32.mrb[0].mxu0
        %v1958 = vadd.f32 0.0, %v1957
        %v1959 = vpop.f32.mrb[0].mxu0
        %1960 = vmatprep.mubr.f32.mxu0 0.0
        %1961 = vmatmul.mubr.f32.gmra.mrb[0].mxu0 %v1878
        %v1962 = vpop.f32.mrb[0].mxu0
        %v1963 = vadd.f32 0.0, %v1962
        %v1964 = vpop.f32.mrb[0].mxu0
        %1965 = vmatprep.mubr.f32.mxu0 0.0
        %1966 = vmatmul.mubr.f32.gmra.mrb[0].mxu0 %v1881
        %v1967 = vpop.f32.mrb[0].mxu0
        %v1968 = vadd.f32 0.0, %v1967
        %v1969 = vpop.f32.mrb[0].mxu0
        %1970 = vdwg.mxu0
        %v1971 = vadd.f32 %v1857, %v1953
        %v1972 = vadd.f32 %v1858, %v1958
        %v1973 = vadd.f32 %v1859, %v1963
        %v1974 = vadd.f32 %v1860, %v1968
        %s1975 = scalar_lea.vmem %s1633, 3
        %v1976 = vld [vmem:[%s1975] ss:$2 sm:$0xff]
        %s1977 = scalar_lea.vmem %s1633, 19
        %v1978 = vld [vmem:[%s1977] ss:$2 sm:$0xff]
        %s1979 = scalar_lea.vmem %s1633, 35
        %v1980 = vld [vmem:[%s1979] ss:$2 sm:$0xff]
        %s1981 = scalar_lea.vmem %s1633, 51
        %v1982 = vld [vmem:[%s1981] ss:$2 sm:$0xff]
        %s1983 = scalar_lea.vmem %s257, 60
        %v1984 = vld [vmem:[%s1983] sm:$0x7]
        %v1986 = vsel %vm285, %v1976, 0
        %v1989 = vsel %vm285, %v1978, 0
        %v1992 = vsel %vm285, %v1980, 0
        %v1995 = vsel %vm285, %v1982, 0
        %v1998 = vsel %vm298, %v1984, 0
        %2000 = vmatprep.subr.mxu0 0.0
        %2001 = vmatpush1.msra.mxu0 %v1998
        %2002 = vmatprep.subr.mxu0 0.0
        %2003 = vmatpush1.msra.mxu0 0.0
        %2004 = vmatprep.subr.mxu0 0.0
        %2005 = vmatpush1.msra.mxu0 0.0
        %2006 = vmatprep.subr.mxu0 0.0
        %2007 = vmatpush1.msra.mxu0 0.0
        %2008 = vmatprep.subr.mxu0 0.0
        %2009 = vmatpush1.msra.mxu0 0.0
        %2010 = vmatprep.subr.mxu0 0.0
        %2011 = vmatpush1.msra.mxu0 0.0
        %2012 = vmatprep.subr.mxu0 0.0
        %2013 = vmatpush1.msra.mxu0 0.0
        %2014 = vmatprep.subr.mxu0 0.0
        %2015 = vmatpush1.msra.mxu0 0.0
        %2016 = vmatprep.subr.mxu0 0.0
        %2017 = vmatpush1.msra.mxu0 0.0
        %2018 = vmatprep.subr.mxu0 0.0
        %2019 = vmatpush1.msra.mxu0 0.0
        %2020 = vmatprep.subr.mxu0 0.0
        %2021 = vmatpush1.msra.mxu0 0.0
        %2022 = vmatprep.subr.mxu0 0.0
        %2023 = vmatpush1.msra.mxu0 0.0
        %2024 = vmatprep.subr.mxu0 0.0
        %2025 = vmatpush1.msra.mxu0 0.0
        %2026 = vmatprep.subr.mxu0 0.0
        %2027 = vmatpush1.msra.mxu0 0.0
        %2028 = vmatprep.subr.mxu0 0.0
        %2029 = vmatpush1.msra.mxu0 0.0
        %2030 = vmatprep.subr.mxu0 0.0
        %2031 = vmatpush1.msra.mxu0 0.0
        %2032 = vmatprep.subr.mxu0 0.0
        %2033 = vmatpush1.msra.mxu0 0.0
        %2034 = vmatprep.subr.mxu0 0.0
        %2035 = vmatpush1.msra.mxu0 0.0
        %2036 = vmatprep.subr.mxu0 0.0
        %2037 = vmatpush1.msra.mxu0 0.0
        %2038 = vmatprep.subr.mxu0 0.0
        %2039 = vmatpush1.msra.mxu0 0.0
        %2040 = vmatprep.subr.mxu0 0.0
        %2041 = vmatpush1.msra.mxu0 0.0
        %2042 = vmatprep.subr.mxu0 0.0
        %2043 = vmatpush1.msra.mxu0 0.0
        %2044 = vmatprep.subr.mxu0 0.0
        %2045 = vmatpush1.msra.mxu0 0.0
        %2046 = vmatprep.subr.mxu0 0.0
        %2047 = vmatpush1.msra.mxu0 0.0
        %2048 = vmatprep.subr.mxu0 0.0
        %2049 = vmatpush1.msra.mxu0 0.0
        %2050 = vmatprep.subr.mxu0 0.0
        %2051 = vmatpush1.msra.mxu0 0.0
        %2052 = vmatprep.subr.mxu0 0.0
        %2053 = vmatpush1.msra.mxu0 0.0
        %2054 = vmatprep.subr.mxu0 0.0
        %2055 = vmatpush1.msra.mxu0 0.0
        %2056 = vmatprep.subr.mxu0 0.0
        %2057 = vmatpush1.msra.mxu0 0.0
        %2058 = vmatprep.subr.mxu0 0.0
        %2059 = vmatpush1.msra.mxu0 0.0
        %2060 = vmatprep.subr.mxu0 0.0
        %2061 = vmatpush1.msra.mxu0 0.0
        %2062 = vmatprep.subr.mxu0 0.0
        %2063 = vmatpush1.msra.mxu0 0.0
        %2064 = vmatprep.mubr.f32.mxu0 0.0
        %2065 = vmatmul.mubr.f32.gmra.mrb[0].mxu0 %v1986
        %v2066 = vpop.f32.mrb[0].mxu0
        %v2067 = vadd.f32 0.0, %v2066
        %v2068 = vpop.f32.mrb[0].mxu0
        %2069 = vmatprep.mubr.f32.mxu0 0.0
        %2070 = vmatmul.mubr.f32.gmra.mrb[0].mxu0 %v1989
        %v2071 = vpop.f32.mrb[0].mxu0
        %v2072 = vadd.f32 0.0, %v2071
        %v2073 = vpop.f32.mrb[0].mxu0
        %2074 = vmatprep.mubr.f32.mxu0 0.0
        %2075 = vmatmul.mubr.f32.gmra.mrb[0].mxu0 %v1992
        %v2076 = vpop.f32.mrb[0].mxu0
        %v2077 = vadd.f32 0.0, %v2076
        %v2078 = vpop.f32.mrb[0].mxu0
        %2079 = vmatprep.mubr.f32.mxu0 0.0
        %2080 = vmatmul.mubr.f32.gmra.mrb[0].mxu0 %v1995
        %v2081 = vpop.f32.mrb[0].mxu0
        %v2082 = vadd.f32 0.0, %v2081
        %v2083 = vpop.f32.mrb[0].mxu0
        %2084 = vdwg.mxu0
        %v2085 = vadd.f32 %v1971, %v2067
        %v2086 = vadd.f32 %v1972, %v2072
        %v2087 = vadd.f32 %v1973, %v2077
        %v2088 = vadd.f32 %v1974, %v2082
        %v2089 = vld [vmem:[%s260] sm:$0x1]
        %v2091 = vlaneseq
        %v2092 = vshrl.u32 %v2091, 7
        %v2093 = vsub.s32 0, %v2092
        %v2094 = vrot.slane %v2089, %v2093
        %v2096 = vmul.f32 %v2085, %v2094
        %v2097 = vmul.f32 %v2086, %v2094
        %v2098 = vmul.f32 %v2087, %v2094
        %v2099 = vmul.f32 %v2088, %v2094
        %v2100 = vld [vmem:[%s263] sm:$0x1]
        %v2102 = vlaneseq
        %v2103 = vshrl.u32 %v2102, 7
        %v2104 = vsub.s32 0, %v2103
        %v2105 = vrot.slane %v2100, %v2104
        %v2107 = vadd.f32 %v2096, %v2105
        %v2108 = vadd.f32 %v2097, %v2105
        %v2109 = vadd.f32 %v2098, %v2105
        %v2110 = vadd.f32 %v2099, %v2105
        %vm2111 = vcmp.ge.f32.partialorder %v2107, 0.0
        %vm2112 = vcmp.ge.f32.partialorder %v2108, 0.0
        %vm2113 = vcmp.ge.f32.partialorder %v2109, 0.0
        %vm2114 = vcmp.ge.f32.partialorder %v2110, 0.0
        %v2115 = vmul.f32 %v2107, 0.2
        %v2116 = vmul.f32 %v2108, 0.2
        %v2117 = vmul.f32 %v2109, 0.2
        %v2118 = vmul.f32 %v2110, 0.2
        %v2119 = vsel %vm2111, %v2107, %v2115
        %v2120 = vsel %vm2112, %v2108, %v2116
        %v2121 = vsel %vm2113, %v2109, %v2117
        %v2122 = vsel %vm2114, %v2110, %v2118
        %vm2123 = vcmask 523264
        %2124 = vst.msk [vmem:[%s248] sm:$0xff] %vm2123, %v2119
        %2125 = vst.msk [vmem:[%s248 + $0x8] sm:$0xff] %vm2123, %v2120
        %2126 = vst.msk [vmem:[%s248 + $0x10] sm:$0xff] %vm2123, %v2121
        %2127 = vst.msk [vmem:[%s248 + $0x18] sm:$0xff] %vm2123, %v2122
        %s2128 = sand.u32 %s153, 1
        %s2129 = scalar_lea.sflag [#allocation3], %s2128
        %s2130 = sand.u32 %s153, 1
        %s2131 = smul.addr %s2130, 32
        %s2132 = scalar_lea.vmem [#allocation2], %s2131
        // Predicated region
        $region37: #{tpu_custom_call.1} parent=35 // pred_check
          %p2133 = pneg %p163
        $region38: #{tpu_custom_call.1} parent=35 // pred_check_branch
          %2135 = sbr.rel (%p2133) target = $region40
        $region39: #{tpu_custom_call.1} parent=35 // pred_region
          %s2137 = ssub.s32 512, 512
          %2138 = vsyncadd %s2129, %s2137
          %s2139 = smul.addr %s25, 4
          %s2140 = sadd.s32 %s24, %s2139
          %s2141 = smul.addr %s23, 128
          %s2142 = sadd.s32 %s2140, %s2141
          %s2143 = smul.addr %s2142, 128
          %s2144 = scalar_lea.hbm %s4, %s2143
          %s2145 = sshll.u32 %s2132, 4
          %s2146 = int_to_ptr.vmem [resolvable:$true] %s2145
          %2151 = dma.vmem_to_hbm [thread:$0]  %s2146, 512, %s2144, %s2129, 128, 128, 8
        $region40: #{tpu_custom_call.1} parent=35 // pred_fallthru
          _
      $region36: #{tpu_custom_call.1} parent=5 // pred_fallthru
        _
      %p2152 = scmp.le.s32.totalorder 2, %s13
      // Predicated region
      $region41: #{tpu_custom_call.1} parent=5 // pred_check
        %p2153 = pneg %p2152
      $region42: #{tpu_custom_call.1} parent=5 // pred_check_branch
        %2155 = sbr.rel (%p2153) target = $region44
      $region43: #{tpu_custom_call.1} parent=5 // pred_region
        %s2156 = ssub.s32 %s13, 2
        // Predicated region
        $region45: #{tpu_custom_call.1} parent=43 // pred_check
          %p2157 = pneg %p169
        $region46: #{tpu_custom_call.1} parent=43 // pred_check_branch
          %2159 = sbr.rel (%p2157) target = $region48
        $region47: #{tpu_custom_call.1} parent=43 // pred_region
          %s2160 = sand.u32 %s154, 1
          %s2161 = scalar_lea.sflag [#allocation3], %s2160
          %s2162 = sand.u32 %s154, 1
          %s2163 = smul.addr %s2162, 32
          %s2164 = scalar_lea.vmem [#allocation2], %s2163
          %2165 = dma.done %s2161, 512
        $region48: #{tpu_custom_call.1} parent=43 // pred_fallthru
          _
      $region44: #{tpu_custom_call.1} parent=5 // pred_fallthru
        _
    $region6: #{tpu_custom_call.1} parent=1 // loop_footer
      %s17 = sadd.s32 1, %s13
    $region7: #{tpu_custom_call.1} parent=1 // loop_footer_branch
      %12 = sbr.rel target = $region3
    $region8: #{tpu_custom_call.1} parent=1 // loop_exit
      _
    %2166 = vsyncpa [#allocation3], 1
    %s2167 = scalar_lea.sflag [#allocation3], 1
    %2168 = vsyncpa %s2167, 1

</llo_original>
